<compile_context>
chip_gen: v7x
topology: tpu7x:2x2x1
jax: 0.10.0
libtpu: 0.0.40
codegen_flags: <defaults>
</compile_context>

<pallas_src>
import functools

import jax
import jax.numpy as jnp
from jax.experimental import pallas as pl
from jax.experimental.pallas import tpu as pltpu


def _round_up(x, m):
    return (x + m - 1) // m * m


def _device_kind():
    try:
        return jax.devices()[0].device_kind.lower()
    except Exception:  # pragma: no cover - defensive
        return ""


def lateral_noskip_kernel(x_ref, wblk_ref, bblk_ref, wfin_ref, bfin_ref, o_ref,
                          *scratch, compute_dtype, tanh_dtype):
    """One (tm, D) batch tile through the whole network.

    x_ref:    (tm, D)      batch tile, original (unpadded) feature dim
    wblk_ref: (L, Dp, Dp)  per-block Linear weights, (in, out) layout, resident
    bblk_ref: (L, 1, Dp)   per-block biases (f32), resident
    wfin_ref: (Dp, Op)     final Linear weight, (in, out) layout, resident
    bfin_ref: (1, Op)      final bias (f32), resident
    o_ref:    (tm, Op)     lane-dense output tile
    scratch:  optional (tm, Dp) f32 VMEM buffer to zero-extend x when D < Dp
    """
    d = x_ref.shape[-1]
    dp = wblk_ref.shape[-1]
    if d == dp:
        h = x_ref[...].astype(jnp.float32)
    else:
        # Zero-extend the unpadded tile to the lane-dense width inside VMEM.
        # Padded columns stay exactly 0 through tanh(0 + 0) + 0 every layer.
        hpad_ref = scratch[0]
        hpad_ref[...] = jnp.zeros_like(hpad_ref)
        hpad_ref[:, :d] = x_ref[...].astype(jnp.float32)
        h = hpad_ref[...]

    num_layers = wblk_ref.shape[0]
    # L is small & static -> Python-unroll into straight-line MXU calls.
    for i in range(num_layers):
        w = wblk_ref[i]                               # (Dp, Dp), compute_dtype
        b = bblk_ref[i].astype(jnp.float32)           # (1, Dp)
        pre = jnp.dot(h.astype(compute_dtype), w,
                      preferred_element_type=jnp.float32) + b
        # tanh on the EUP; bf16 on bf16-EUP chips (~2x throughput), f32 on v5x.
        act = jnp.tanh(pre.astype(tanh_dtype)).astype(jnp.float32)
        h = act + h                                   # residual stays f32

    y = jnp.dot(h.astype(compute_dtype), wfin_ref[...],
                preferred_element_type=jnp.float32)
    y = y + bfin_ref[...].astype(jnp.float32)
    y = jnp.tanh(y.astype(tanh_dtype)).astype(jnp.float32)
    o_ref[...] = (jnp.pi * y).astype(o_ref.dtype)


def prepare_lateral_noskip_params(wblk, bblk, wfin, bfin, *,
                                  compute_dtype=jnp.bfloat16):
    """Pad & cast the static weights ONCE (hoisted out of the per-call path).

    wblk: (L, D, D)  per-block weights in (in, out) layout (i.e. torch W.T)
    bblk: (L, 1, D)
    wfin: (D, O)     final weight in (in, out) layout
    bfin: (1, O)
    """
    L, D, _ = wblk.shape
    O = wfin.shape[1]
    kind = _device_kind()
    # v6e/v7x MXU is 2x256x256: match the 256-deep contraction once D is large
    # enough to matter.  v5e's 128x128 MXU is already matched by 128 multiples.
    dp_mult = 256 if (("v6" in kind or "v7" in kind) and D > 128) else 128
    Dp = _round_up(D, dp_mult)
    Op = _round_up(O, 128)
    return dict(
        wblk=jnp.pad(wblk, ((0, 0), (0, Dp - D), (0, Dp - D))).astype(compute_dtype),
        bblk=jnp.pad(bblk, ((0, 0), (0, 0), (0, Dp - D))).astype(jnp.float32),
        wfin=jnp.pad(wfin, ((0, Dp - D), (0, Op - O))).astype(compute_dtype),
        bfin=jnp.pad(bfin, ((0, 0), (0, Op - O))).astype(jnp.float32),
        d=D, o=O, dp=Dp, op=Op, L=L, compute_dtype=compute_dtype,
    )


def lateral_noskip(x, params, *, tanh_dtype=None, unpad_output=True):
    """Pallas forward for LateralNoSkip.  x: (B, D)."""
    B, D = x.shape
    assert D == params["d"], "feature dim mismatch with prepared params"
    Dp, Op, O, L = params["dp"], params["op"], params["o"], params["L"]
    compute_dtype = params["compute_dtype"]

    kind = _device_kind()
    if tanh_dtype is None:
        # bf16 EUP exists on v6e/v7x (packed pairs, ~2x throughput); v5x keeps f32.
        tanh_dtype = jnp.bfloat16 if ("v6" in kind or "v7" in kind) else jnp.float32
    two_tc = "v7" in kind  # v7x: 2 TensorCores per chip

    # ---- batch tiling: as big as the tile VMEM budget allows ----------------
    need_pad_scratch = Dp != D
    x_itemsize = jnp.dtype(x.dtype).itemsize
    out_itemsize = x_itemsize
    Bp8 = _round_up(max(B, 1), 8)
    row_bytes = (2 * D * x_itemsize                     # double-buffered input tile
                 + 2 * Op * out_itemsize                # double-buffered output tile
                 + (Dp * 4 if need_pad_scratch else 0))  # zero-extend scratch (single)
    tile_budget = 24 << 20
    tm_cap = max(256, min(4096, (tile_budget // max(row_bytes, 1)) // 8 * 8))
    steps = int(pl.cdiv(Bp8, tm_cap))
    if two_tc:
        # Keep an even number of >=2 steps so the "parallel" batch axis is
        # actually split across both TensorCores on v7x.
        steps = max(steps, 2)
        steps += steps % 2
    tm = _round_up(int(pl.cdiv(Bp8, steps)), 8)
    Bp = tm * steps

    # Only a row pad (cheap; usually a no-op) -- the feature dim is NOT padded.
    x_p = x if Bp == B else jnp.pad(x, ((0, Bp - B), (0, 0)))

    grid = (steps,)
    in_specs = [
        pl.BlockSpec((tm, D), lambda i: (i, 0)),          # batch tile, pipelined
        pl.BlockSpec((L, Dp, Dp), lambda i: (0, 0, 0)),   # weights, VMEM-resident
        pl.BlockSpec((L, 1, Dp), lambda i: (0, 0, 0)),    # biases, resident
        pl.BlockSpec((Dp, Op), lambda i: (0, 0)),         # final weight, resident
        pl.BlockSpec((1, Op), lambda i: (0, 0)),          # final bias, resident
    ]
    out_specs = pl.BlockSpec((tm, Op), lambda i: (i, 0))
    scratch_shapes = ([pltpu.VMEM((tm, Dp), jnp.float32)]
                      if need_pad_scratch else [])

    # ---- VMEM budget ---------------------------------------------------------
    w_it = jnp.dtype(compute_dtype).itemsize
    # Pallas allocates 2 buffers per input even with a constant index_map, so
    # the "resident" weights are counted twice.
    resident_bytes = 2 * ((L * Dp * Dp + Dp * Op) * w_it + (L * Dp + Op) * 4)
    tile_bytes = tm * row_bytes
    # Cap well below v7x's 64 MiB physical per-TC VMEM (v5e/v6e have 128 MiB).
    vmem_limit = int(min(48 << 20,
                         max(16 << 20, resident_bytes + tile_bytes + (4 << 20))))

    cost = pl.CostEstimate(
        flops=2 * Bp * (L * Dp * Dp + Dp * Op),
        transcendentals=Bp * (L * Dp + Op),
        bytes_accessed=(x_p.nbytes + params["wblk"].nbytes + params["bblk"].nbytes
                        + params["wfin"].nbytes + params["bfin"].nbytes
                        + Bp * Op * out_itemsize),
    )

    out_p = pl.pallas_call(
        functools.partial(lateral_noskip_kernel,
                          compute_dtype=compute_dtype, tanh_dtype=tanh_dtype),
        out_shape=jax.ShapeDtypeStruct((Bp, Op), x.dtype),
        grid=grid,
        in_specs=in_specs,
        out_specs=out_specs,
        scratch_shapes=scratch_shapes,
        compiler_params=pltpu.CompilerParams(
            dimension_semantics=("parallel",),   # batch axis -> both TCs on v7x
            vmem_limit_bytes=vmem_limit,
        ),
        cost_estimate=cost,
    )(x_p, params["wblk"], params["bblk"], params["wfin"], params["bfin"])

    if unpad_output:
        return out_p[:B, :O]
    return out_p  # lane-dense padded (Bp, Op); padded entries are exactly 0


def lateral_noskip_ref(x, wblk, bblk, wfin, bfin):
    """Pure-JAX f32 reference mirroring the PyTorch module."""
    h = x.astype(jnp.float32)
    for i in range(wblk.shape[0]):
        h = jnp.tanh(h @ wblk[i] + bblk[i]) + h
    return jnp.pi * jnp.tanh(h @ wfin + bfin)


if __name__ == "__main__":
    # Small shapes consistent with the module's forward: x is (batch, input_size).
    batch = 512
    input_size = 32
    num_layers = 3
    num_outputs = 8

    key = jax.random.PRNGKey(0)
    kx, kw, kb, kwf, kbf = jax.random.split(key, 5)

    bound_in = 1.0 / (input_size ** 0.5)
    x = jax.random.normal(kx, (batch, input_size), dtype=jnp.float32)
    # Weights are stored in (in, out) layout (== torch Linear weight transposed).
    wblk = jax.random.uniform(kw, (num_layers, input_size, input_size),
                              minval=-bound_in, maxval=bound_in, dtype=jnp.float32)
    bblk = jax.random.uniform(kb, (num_layers, 1, input_size),
                              minval=-bound_in, maxval=bound_in, dtype=jnp.float32)
    wfin = jax.random.uniform(kwf, (input_size, num_outputs),
                              minval=-bound_in, maxval=bound_in, dtype=jnp.float32)
    bfin = jax.random.uniform(kbf, (1, num_outputs),
                              minval=-bound_in, maxval=bound_in, dtype=jnp.float32)

    # Pad/cast weights once (hoisted out of the per-call path).
    params = prepare_lateral_noskip_params(wblk, bblk, wfin, bfin)

    out = lateral_noskip(x, params)
    out = jax.block_until_ready(out)

    ref = lateral_noskip_ref(x, wblk, bblk, wfin, bfin)
    assert out.shape == (batch, num_outputs)
    if jnp.dtype(params["compute_dtype"]) == jnp.dtype(jnp.float32):
        atol = rtol = 1e-5
    else:
        # bf16 MXU operands (and bf16 tanh on v6e/v7x); f32 accumulation/residual.
        atol = rtol = 5e-2
    assert jnp.allclose(out, ref, atol=atol, rtol=rtol), \
        "Pallas output mismatch vs reference"

    print("KERNEL_OK")
</pallas_src>

<mosaic_0001>
module attributes {stable_mosaic.version = 11 : i64} {
  func.func @lateral_noskip_kernel(%arg0: i32, %arg1: memref<512x32xf32, #tpu.memory_space<vmem>>, %arg2: memref<3x128x128xbf16, #tpu.memory_space<vmem>>, %arg3: memref<3x1x128xf32, #tpu.memory_space<vmem>>, %arg4: memref<128x128xbf16, #tpu.memory_space<vmem>>, %arg5: memref<1x128xf32, #tpu.memory_space<vmem>>, %arg6: memref<512x128xf32, #tpu.memory_space<vmem>>, %arg7: memref<512x128xf32, #tpu.memory_space<vmem>>) attributes {dimension_semantics = [#tpu.dimension_semantics<parallel>], iteration_bounds = array<i64: 1>, scalar_prefetch = 0 : i64, scratch_operands = 1 : i64, tpu.core_type = #tpu.core_type<tc>, window_params = [{transform_indices = @transform_0, window_bounds = array<i64: 512, 32>}, {pipeline_mode = #tpu.pipeline_mode<synchronous>, transform_indices = @transform_1, window_bounds = array<i64: 3, 128, 128>}, {pipeline_mode = #tpu.pipeline_mode<synchronous>, transform_indices = @transform_2, window_bounds = array<i64: 3, 1, 128>}, {pipeline_mode = #tpu.pipeline_mode<synchronous>, transform_indices = @transform_3, window_bounds = array<i64: 128, 128>}, {pipeline_mode = #tpu.pipeline_mode<synchronous>, transform_indices = @transform_4, window_bounds = array<i64: 1, 128>}, {transform_indices = @transform_5, window_bounds = array<i64: 512, 128>}]} {
    %cst = arith.constant 0.000000e+00 : f32
    %0 = vector.broadcast %cst : f32 to vector<512x128xf32>
    %c0 = arith.constant 0 : index
    %c0_0 = arith.constant 0 : index
    %1 = vector.load %arg7[%c0, %c0_0] : memref<512x128xf32, #tpu.memory_space<vmem>>, vector<512x128xf32>
    tpu.vector_store %arg7[%c0, %c0_0], %0 {strides = array<i32>} : memref<512x128xf32, #tpu.memory_space<vmem>>, vector<512x128xf32>,
    %c0_1 = arith.constant 0 : index
    %c0_2 = arith.constant 0 : index
    %2 = vector.load %arg1[%c0_1, %c0_2] : memref<512x32xf32, #tpu.memory_space<vmem>>, vector<512x32xf32>
    %c0_3 = arith.constant 0 : index
    %c0_4 = arith.constant 0 : index
    %3 = vector.load %arg7[%c0_3, %c0_4] : memref<512x128xf32, #tpu.memory_space<vmem>>, vector<512x32xf32>
    tpu.vector_store %arg7[%c0_3, %c0_4], %2 {strides = array<i32>} : memref<512x128xf32, #tpu.memory_space<vmem>>, vector<512x32xf32>,
    %c0_5 = arith.constant 0 : index
    %c0_6 = arith.constant 0 : index
    %4 = vector.load %arg7[%c0_5, %c0_6] : memref<512x128xf32, #tpu.memory_space<vmem>>, vector<512x128xf32>
    %c0_7 = arith.constant 0 : index
    %c0_8 = arith.constant 0 : index
    %c0_9 = arith.constant 0 : index
    %5 = vector.load %arg2[%c0_7, %c0_8, %c0_9] : memref<3x128x128xbf16, #tpu.memory_space<vmem>>, vector<1x128x128xbf16>
    %6 = vector.shape_cast %5 : vector<1x128x128xbf16> to vector<128x128xbf16>
    %c0_10 = arith.constant 0 : index
    %c0_11 = arith.constant 0 : index
    %c0_12 = arith.constant 0 : index
    %7 = vector.load %arg3[%c0_10, %c0_11, %c0_12] : memref<3x1x128xf32, #tpu.memory_space<vmem>>, vector<1x1x128xf32>
    %8 = vector.shape_cast %7 : vector<1x1x128xf32> to vector<1x128xf32>
    %9 = arith.truncf %4 : vector<512x128xf32> to vector<512x128xbf16>
    %cst_13 = arith.constant dense<0.000000e+00> : vector<512x128xf32>
    %10 = tpu.matmul %9, %6, %cst_13 {dimension_numbers = #tpu.dot_dimension_numbers<[1], [0], [0], [1], [0, 0, 1, 1], [], []>} : vector<512x128xbf16>, vector<128x128xbf16>, vector<512x128xf32> -> vector<512x128xf32>
    %11 = vector.broadcast %8 : vector<1x128xf32> to vector<512x128xf32>
    %12 = arith.addf %10, %11 : vector<512x128xf32>
    %13 = math.tanh %12 : vector<512x128xf32>
    %14 = arith.addf %13, %4 : vector<512x128xf32>
    %c1 = arith.constant 1 : index
    %c0_14 = arith.constant 0 : index
    %c0_15 = arith.constant 0 : index
    %15 = vector.load %arg2[%c1, %c0_14, %c0_15] : memref<3x128x128xbf16, #tpu.memory_space<vmem>>, vector<1x128x128xbf16>
    %16 = vector.shape_cast %15 : vector<1x128x128xbf16> to vector<128x128xbf16>
    %c1_16 = arith.constant 1 : index
    %c0_17 = arith.constant 0 : index
    %c0_18 = arith.constant 0 : index
    %17 = vector.load %arg3[%c1_16, %c0_17, %c0_18] : memref<3x1x128xf32, #tpu.memory_space<vmem>>, vector<1x1x128xf32>
    %18 = vector.shape_cast %17 : vector<1x1x128xf32> to vector<1x128xf32>
    %19 = arith.truncf %14 : vector<512x128xf32> to vector<512x128xbf16>
    %cst_19 = arith.constant dense<0.000000e+00> : vector<512x128xf32>
    %20 = tpu.matmul %19, %16, %cst_19 {dimension_numbers = #tpu.dot_dimension_numbers<[1], [0], [0], [1], [0, 0, 1, 1], [], []>} : vector<512x128xbf16>, vector<128x128xbf16>, vector<512x128xf32> -> vector<512x128xf32>
    %21 = vector.broadcast %18 : vector<1x128xf32> to vector<512x128xf32>
    %22 = arith.addf %20, %21 : vector<512x128xf32>
    %23 = math.tanh %22 : vector<512x128xf32>
    %24 = arith.addf %23, %14 : vector<512x128xf32>
    %c2 = arith.constant 2 : index
    %c0_20 = arith.constant 0 : index
    %c0_21 = arith.constant 0 : index
    %25 = vector.load %arg2[%c2, %c0_20, %c0_21] : memref<3x128x128xbf16, #tpu.memory_space<vmem>>, vector<1x128x128xbf16>
    %26 = vector.shape_cast %25 : vector<1x128x128xbf16> to vector<128x128xbf16>
    %c2_22 = arith.constant 2 : index
    %c0_23 = arith.constant 0 : index
    %c0_24 = arith.constant 0 : index
    %27 = vector.load %arg3[%c2_22, %c0_23, %c0_24] : memref<3x1x128xf32, #tpu.memory_space<vmem>>, vector<1x1x128xf32>
    %28 = vector.shape_cast %27 : vector<1x1x128xf32> to vector<1x128xf32>
    %29 = arith.truncf %24 : vector<512x128xf32> to vector<512x128xbf16>
    %cst_25 = arith.constant dense<0.000000e+00> : vector<512x128xf32>
    %30 = tpu.matmul %29, %26, %cst_25 {dimension_numbers = #tpu.dot_dimension_numbers<[1], [0], [0], [1], [0, 0, 1, 1], [], []>} : vector<512x128xbf16>, vector<128x128xbf16>, vector<512x128xf32> -> vector<512x128xf32>
    %31 = vector.broadcast %28 : vector<1x128xf32> to vector<512x128xf32>
    %32 = arith.addf %30, %31 : vector<512x128xf32>
    %33 = math.tanh %32 : vector<512x128xf32>
    %34 = arith.addf %33, %24 : vector<512x128xf32>
    %35 = arith.truncf %34 : vector<512x128xf32> to vector<512x128xbf16>
    %c0_26 = arith.constant 0 : index
    %c0_27 = arith.constant 0 : index
    %36 = vector.load %arg4[%c0_26, %c0_27] : memref<128x128xbf16, #tpu.memory_space<vmem>>, vector<128x128xbf16>
    %cst_28 = arith.constant dense<0.000000e+00> : vector<512x128xf32>
    %37 = tpu.matmul %35, %36, %cst_28 {dimension_numbers = #tpu.dot_dimension_numbers<[1], [0], [0], [1], [0, 0, 1, 1], [], []>} : vector<512x128xbf16>, vector<128x128xbf16>, vector<512x128xf32> -> vector<512x128xf32>
    %c0_29 = arith.constant 0 : index
    %c0_30 = arith.constant 0 : index
    %38 = vector.load %arg5[%c0_29, %c0_30] : memref<1x128xf32, #tpu.memory_space<vmem>>, vector<1x128xf32>
    %39 = vector.broadcast %38 : vector<1x128xf32> to vector<512x128xf32>
    %40 = arith.addf %37, %39 : vector<512x128xf32>
    %41 = math.tanh %40 : vector<512x128xf32>
    %cst_31 = arith.constant 3.14159274 : f32
    %42 = vector.broadcast %cst_31 : f32 to vector<512x128xf32>
    %43 = arith.mulf %42, %41 : vector<512x128xf32>
    %c0_32 = arith.constant 0 : index
    %c0_33 = arith.constant 0 : index
    %44 = vector.load %arg6[%c0_32, %c0_33] : memref<512x128xf32, #tpu.memory_space<vmem>>, vector<512x128xf32>
    tpu.vector_store %arg6[%c0_32, %c0_33], %43 {strides = array<i32>} : memref<512x128xf32, #tpu.memory_space<vmem>>, vector<512x128xf32>,
    return
  }
  func.func @transform_0(%arg0: i32) -> (i32, i32) {
    %c0_i32 = arith.constant 0 : i32
    %c0_i32_0 = arith.constant 0 : i32
    return %arg0, %c0_i32 : i32, i32
  }
  func.func @transform_1(%arg0: i32) -> (i32, i32, i32) {
    %c0_i32 = arith.constant 0 : i32
    %c0_i32_0 = arith.constant 0 : i32
    %c0_i32_1 = arith.constant 0 : i32
    %c0_i32_2 = arith.constant 0 : i32
    return %c0_i32, %c0_i32_0, %c0_i32_1 : i32, i32, i32
  }
  func.func @transform_2(%arg0: i32) -> (i32, i32, i32) {
    %c0_i32 = arith.constant 0 : i32
    %c0_i32_0 = arith.constant 0 : i32
    %c0_i32_1 = arith.constant 0 : i32
    %c0_i32_2 = arith.constant 0 : i32
    return %c0_i32, %c0_i32_0, %c0_i32_1 : i32, i32, i32
  }
  func.func @transform_3(%arg0: i32) -> (i32, i32) {
    %c0_i32 = arith.constant 0 : i32
    %c0_i32_0 = arith.constant 0 : i32
    %c0_i32_1 = arith.constant 0 : i32
    return %c0_i32, %c0_i32_0 : i32, i32
  }
  func.func @transform_4(%arg0: i32) -> (i32, i32) {
    %c0_i32 = arith.constant 0 : i32
    %c0_i32_0 = arith.constant 0 : i32
    %c0_i32_1 = arith.constant 0 : i32
    return %c0_i32, %c0_i32_0 : i32, i32
  }
  func.func @transform_5(%arg0: i32) -> (i32, i32) {
    %c0_i32 = arith.constant 0 : i32
    %c0_i32_0 = arith.constant 0 : i32
    return %arg0, %c0_i32 : i32, i32
  }
}

</mosaic_0001>

<llo_original>
// kernel: tpu_custom_call.1
$region0: #{tpu_custom_call.1}
  #allocation0 [shape = 'u32[]', space=smem, size = 0x4, offset = 0x4, fixed_abs, tag = 'smem constant byte address 0x4 - core index']
  #allocation1 [shape = 'u32[144,128]{1,0:T(1,128)}', space=vmem, size = 0x12000, scoped, tag = 'internal scratch']
  #allocation2 [shape = 'f32[512,128]{1,0:T(8,128)}', space=vmem, size = 0x40000, scoped, tag = 'scratch operand']
  %s0 = inlined_call_operand.vmem [shape: f32[512,32], index: 0, kind: input, shape index: {}]
  %s1 = inlined_call_operand.vmem [shape: bf16[3,128,128], index: 1, kind: input, shape index: {}]
  %s2 = inlined_call_operand.vmem [shape: f32[3,1,128], index: 2, kind: input, shape index: {}]
  %s3 = inlined_call_operand.vmem [shape: bf16[128,128], index: 3, kind: input, shape index: {}]
  %s4 = inlined_call_operand.vmem [shape: f32[1,128], index: 4, kind: input, shape index: {}]
  %s5 = inlined_call_operand.hbm [shape: f32[512,128], index: 5, kind: output, shape index: {}]
  %s6 = sld [smem:[#allocation0]]
  $region30: #{tpu_custom_call.1} parent=0
    _
  %s8 = ssub.s32 1, %s6
  %s9 = scalar_select 0, %s8, %s6
  $region1: #{tpu_custom_call.1} parent=0
    #allocation3 [shape = 'u8[262144]{0}', space=vmem, size = 0x40000, scoped, tag = 'output window, operand 0, single buffered']
    #allocation4 [shape = 's32[1]{0}', space=sflag, size = 0x4, scoped, tag = 'scoped memory for tpu_custom_call.1']
    %10 = vsyncpa [#allocation4], 0
    // Predicated region
    $region2: #{tpu_custom_call.1} parent=1 // pred_check
      _
    $region3: #{tpu_custom_call.1} parent=1 // pred_check_branch
      %12 = sbr.rel (0) target = $region5
    $region4: #{tpu_custom_call.1} parent=1 // pred_region
      _
    $region5: #{tpu_custom_call.1} parent=1 // pred_fallthru
      _
    // Predicated region
    $region6: #{tpu_custom_call.1} parent=1 // pred_check
      _
    $region7: #{tpu_custom_call.1} parent=1 // pred_check_branch
      %14 = sbr.rel (0) target = $region9
    $region8: #{tpu_custom_call.1} parent=1 // pred_region
      _
    $region9: #{tpu_custom_call.1} parent=1 // pred_fallthru
      _
    // Predicated region
    $region10: #{tpu_custom_call.1} parent=1 // pred_check
      _
    $region11: #{tpu_custom_call.1} parent=1 // pred_check_branch
      %16 = sbr.rel (0) target = $region13
    $region12: #{tpu_custom_call.1} parent=1 // pred_region
      _
    $region13: #{tpu_custom_call.1} parent=1 // pred_fallthru
      _
    // Predicated region
    $region14: #{tpu_custom_call.1} parent=1 // pred_check
      _
    $region15: #{tpu_custom_call.1} parent=1 // pred_check_branch
      %18 = sbr.rel (0) target = $region17
    $region16: #{tpu_custom_call.1} parent=1 // pred_region
      _
    $region17: #{tpu_custom_call.1} parent=1 // pred_fallthru
      _
    // Predicated region
    $region18: #{tpu_custom_call.1} parent=1 // pred_check
      _
    $region19: #{tpu_custom_call.1} parent=1 // pred_check_branch
      %20 = sbr.rel (0) target = $region21
    $region20: #{tpu_custom_call.1} parent=1 // pred_region
      _
    $region21: #{tpu_custom_call.1} parent=1 // pred_fallthru
      _
    %22 = vst [vmem:[#allocation2] sm:$0xff] 0.0
    %23 = vst [vmem:[#allocation2 + $0x8] sm:$0xff] 0.0
    %24 = vst [vmem:[#allocation2 + $0x10] sm:$0xff] 0.0
    %25 = vst [vmem:[#allocation2 + $0x18] sm:$0xff] 0.0
    %26 = vst [vmem:[#allocation2 + $0x20] sm:$0xff] 0.0
    %27 = vst [vmem:[#allocation2 + $0x28] sm:$0xff] 0.0
    %28 = vst [vmem:[#allocation2 + $0x30] sm:$0xff] 0.0
    %29 = vst [vmem:[#allocation2 + $0x38] sm:$0xff] 0.0
    %30 = vst [vmem:[#allocation2 + $0x40] sm:$0xff] 0.0
    %31 = vst [vmem:[#allocation2 + $0x48] sm:$0xff] 0.0
    %32 = vst [vmem:[#allocation2 + $0x50] sm:$0xff] 0.0
    %33 = vst [vmem:[#allocation2 + $0x58] sm:$0xff] 0.0
    %34 = vst [vmem:[#allocation2 + $0x60] sm:$0xff] 0.0
    %35 = vst [vmem:[#allocation2 + $0x68] sm:$0xff] 0.0
    %36 = vst [vmem:[#allocation2 + $0x70] sm:$0xff] 0.0
    %37 = vst [vmem:[#allocation2 + $0x78] sm:$0xff] 0.0
    %38 = vst [vmem:[#allocation2 + $0x80] sm:$0xff] 0.0
    %39 = vst [vmem:[#allocation2 + $0x88] sm:$0xff] 0.0
    %40 = vst [vmem:[#allocation2 + $0x90] sm:$0xff] 0.0
    %41 = vst [vmem:[#allocation2 + $0x98] sm:$0xff] 0.0
    %42 = vst [vmem:[#allocation2 + $0xa0] sm:$0xff] 0.0
    %43 = vst [vmem:[#allocation2 + $0xa8] sm:$0xff] 0.0
    %44 = vst [vmem:[#allocation2 + $0xb0] sm:$0xff] 0.0
    %45 = vst [vmem:[#allocation2 + $0xb8] sm:$0xff] 0.0
    %46 = vst [vmem:[#allocation2 + $0xc0] sm:$0xff] 0.0
    %47 = vst [vmem:[#allocation2 + $0xc8] sm:$0xff] 0.0
    %48 = vst [vmem:[#allocation2 + $0xd0] sm:$0xff] 0.0
    %49 = vst [vmem:[#allocation2 + $0xd8] sm:$0xff] 0.0
    %50 = vst [vmem:[#allocation2 + $0xe0] sm:$0xff] 0.0
    %51 = vst [vmem:[#allocation2 + $0xe8] sm:$0xff] 0.0
    %52 = vst [vmem:[#allocation2 + $0xf0] sm:$0xff] 0.0
    %53 = vst [vmem:[#allocation2 + $0xf8] sm:$0xff] 0.0
    %54 = vst [vmem:[#allocation2 + $0x100] sm:$0xff] 0.0
    %55 = vst [vmem:[#allocation2 + $0x108] sm:$0xff] 0.0
    %56 = vst [vmem:[#allocation2 + $0x110] sm:$0xff] 0.0
    %57 = vst [vmem:[#allocation2 + $0x118] sm:$0xff] 0.0
    %58 = vst [vmem:[#allocation2 + $0x120] sm:$0xff] 0.0
    %59 = vst [vmem:[#allocation2 + $0x128] sm:$0xff] 0.0
    %60 = vst [vmem:[#allocation2 + $0x130] sm:$0xff] 0.0
    %61 = vst [vmem:[#allocation2 + $0x138] sm:$0xff] 0.0
    %62 = vst [vmem:[#allocation2 + $0x140] sm:$0xff] 0.0
    %63 = vst [vmem:[#allocation2 + $0x148] sm:$0xff] 0.0
    %64 = vst [vmem:[#allocation2 + $0x150] sm:$0xff] 0.0
    %65 = vst [vmem:[#allocation2 + $0x158] sm:$0xff] 0.0
    %66 = vst [vmem:[#allocation2 + $0x160] sm:$0xff] 0.0
    %67 = vst [vmem:[#allocation2 + $0x168] sm:$0xff] 0.0
    %68 = vst [vmem:[#allocation2 + $0x170] sm:$0xff] 0.0
    %69 = vst [vmem:[#allocation2 + $0x178] sm:$0xff] 0.0
    %70 = vst [vmem:[#allocation2 + $0x180] sm:$0xff] 0.0
    %71 = vst [vmem:[#allocation2 + $0x188] sm:$0xff] 0.0
    %72 = vst [vmem:[#allocation2 + $0x190] sm:$0xff] 0.0
    %73 = vst [vmem:[#allocation2 + $0x198] sm:$0xff] 0.0
    %74 = vst [vmem:[#allocation2 + $0x1a0] sm:$0xff] 0.0
    %75 = vst [vmem:[#allocation2 + $0x1a8] sm:$0xff] 0.0
    %76 = vst [vmem:[#allocation2 + $0x1b0] sm:$0xff] 0.0
    %77 = vst [vmem:[#allocation2 + $0x1b8] sm:$0xff] 0.0
    %78 = vst [vmem:[#allocation2 + $0x1c0] sm:$0xff] 0.0
    %79 = vst [vmem:[#allocation2 + $0x1c8] sm:$0xff] 0.0
    %80 = vst [vmem:[#allocation2 + $0x1d0] sm:$0xff] 0.0
    %81 = vst [vmem:[#allocation2 + $0x1d8] sm:$0xff] 0.0
    %82 = vst [vmem:[#allocation2 + $0x1e0] sm:$0xff] 0.0
    %83 = vst [vmem:[#allocation2 + $0x1e8] sm:$0xff] 0.0
    %84 = vst [vmem:[#allocation2 + $0x1f0] sm:$0xff] 0.0
    %85 = vst [vmem:[#allocation2 + $0x1f8] sm:$0xff] 0.0
    %v86 = vld [vmem:[%s0] sm:$0xff]
    %v87 = vld [vmem:[%s0 + $0x8] sm:$0xff]
    %v88 = vld [vmem:[%s0 + $0x10] sm:$0xff]
    %v89 = vld [vmem:[%s0 + $0x18] sm:$0xff]
    %v90 = vld [vmem:[%s0 + $0x20] sm:$0xff]
    %v91 = vld [vmem:[%s0 + $0x28] sm:$0xff]
    %v92 = vld [vmem:[%s0 + $0x30] sm:$0xff]
    %v93 = vld [vmem:[%s0 + $0x38] sm:$0xff]
    %v94 = vld [vmem:[%s0 + $0x40] sm:$0xff]
    %v95 = vld [vmem:[%s0 + $0x48] sm:$0xff]
    %v96 = vld [vmem:[%s0 + $0x50] sm:$0xff]
    %v97 = vld [vmem:[%s0 + $0x58] sm:$0xff]
    %v98 = vld [vmem:[%s0 + $0x60] sm:$0xff]
    %v99 = vld [vmem:[%s0 + $0x68] sm:$0xff]
    %v100 = vld [vmem:[%s0 + $0x70] sm:$0xff]
    %v101 = vld [vmem:[%s0 + $0x78] sm:$0xff]
    %v102 = vld [vmem:[%s0 + $0x80] sm:$0xff]
    %v103 = vld [vmem:[%s0 + $0x88] sm:$0xff]
    %v104 = vld [vmem:[%s0 + $0x90] sm:$0xff]
    %v105 = vld [vmem:[%s0 + $0x98] sm:$0xff]
    %v106 = vld [vmem:[%s0 + $0xa0] sm:$0xff]
    %v107 = vld [vmem:[%s0 + $0xa8] sm:$0xff]
    %v108 = vld [vmem:[%s0 + $0xb0] sm:$0xff]
    %v109 = vld [vmem:[%s0 + $0xb8] sm:$0xff]
    %v110 = vld [vmem:[%s0 + $0xc0] sm:$0xff]
    %v111 = vld [vmem:[%s0 + $0xc8] sm:$0xff]
    %v112 = vld [vmem:[%s0 + $0xd0] sm:$0xff]
    %v113 = vld [vmem:[%s0 + $0xd8] sm:$0xff]
    %v114 = vld [vmem:[%s0 + $0xe0] sm:$0xff]
    %v115 = vld [vmem:[%s0 + $0xe8] sm:$0xff]
    %v116 = vld [vmem:[%s0 + $0xf0] sm:$0xff]
    %v117 = vld [vmem:[%s0 + $0xf8] sm:$0xff]
    %v118 = vld [vmem:[%s0 + $0x100] sm:$0xff]
    %v119 = vld [vmem:[%s0 + $0x108] sm:$0xff]
    %v120 = vld [vmem:[%s0 + $0x110] sm:$0xff]
    %v121 = vld [vmem:[%s0 + $0x118] sm:$0xff]
    %v122 = vld [vmem:[%s0 + $0x120] sm:$0xff]
    %v123 = vld [vmem:[%s0 + $0x128] sm:$0xff]
    %v124 = vld [vmem:[%s0 + $0x130] sm:$0xff]
    %v125 = vld [vmem:[%s0 + $0x138] sm:$0xff]
    %v126 = vld [vmem:[%s0 + $0x140] sm:$0xff]
    %v127 = vld [vmem:[%s0 + $0x148] sm:$0xff]
    %v128 = vld [vmem:[%s0 + $0x150] sm:$0xff]
    %v129 = vld [vmem:[%s0 + $0x158] sm:$0xff]
    %v130 = vld [vmem:[%s0 + $0x160] sm:$0xff]
    %v131 = vld [vmem:[%s0 + $0x168] sm:$0xff]
    %v132 = vld [vmem:[%s0 + $0x170] sm:$0xff]
    %v133 = vld [vmem:[%s0 + $0x178] sm:$0xff]
    %v134 = vld [vmem:[%s0 + $0x180] sm:$0xff]
    %v135 = vld [vmem:[%s0 + $0x188] sm:$0xff]
    %v136 = vld [vmem:[%s0 + $0x190] sm:$0xff]
    %v137 = vld [vmem:[%s0 + $0x198] sm:$0xff]
    %v138 = vld [vmem:[%s0 + $0x1a0] sm:$0xff]
    %v139 = vld [vmem:[%s0 + $0x1a8] sm:$0xff]
    %v140 = vld [vmem:[%s0 + $0x1b0] sm:$0xff]
    %v141 = vld [vmem:[%s0 + $0x1b8] sm:$0xff]
    %v142 = vld [vmem:[%s0 + $0x1c0] sm:$0xff]
    %v143 = vld [vmem:[%s0 + $0x1c8] sm:$0xff]
    %v144 = vld [vmem:[%s0 + $0x1d0] sm:$0xff]
    %v145 = vld [vmem:[%s0 + $0x1d8] sm:$0xff]
    %v146 = vld [vmem:[%s0 + $0x1e0] sm:$0xff]
    %v147 = vld [vmem:[%s0 + $0x1e8] sm:$0xff]
    %v148 = vld [vmem:[%s0 + $0x1f0] sm:$0xff]
    %v149 = vld [vmem:[%s0 + $0x1f8] sm:$0xff]
    %vm150 = vcmask 261120
    %151 = vst.msk [vmem:[#allocation2] sm:$0xff] %vm150, %v86
    %152 = vst.msk [vmem:[#allocation2 + $0x8] sm:$0xff] %vm150, %v87
    %153 = vst.msk [vmem:[#allocation2 + $0x10] sm:$0xff] %vm150, %v88
    %154 = vst.msk [vmem:[#allocation2 + $0x18] sm:$0xff] %vm150, %v89
    %155 = vst.msk [vmem:[#allocation2 + $0x20] sm:$0xff] %vm150, %v90
    %156 = vst.msk [vmem:[#allocation2 + $0x28] sm:$0xff] %vm150, %v91
    %157 = vst.msk [vmem:[#allocation2 + $0x30] sm:$0xff] %vm150, %v92
    %158 = vst.msk [vmem:[#allocation2 + $0x38] sm:$0xff] %vm150, %v93
    %159 = vst.msk [vmem:[#allocation2 + $0x40] sm:$0xff] %vm150, %v94
    %160 = vst.msk [vmem:[#allocation2 + $0x48] sm:$0xff] %vm150, %v95
    %161 = vst.msk [vmem:[#allocation2 + $0x50] sm:$0xff] %vm150, %v96
    %162 = vst.msk [vmem:[#allocation2 + $0x58] sm:$0xff] %vm150, %v97
    %163 = vst.msk [vmem:[#allocation2 + $0x60] sm:$0xff] %vm150, %v98
    %164 = vst.msk [vmem:[#allocation2 + $0x68] sm:$0xff] %vm150, %v99
    %165 = vst.msk [vmem:[#allocation2 + $0x70] sm:$0xff] %vm150, %v100
    %166 = vst.msk [vmem:[#allocation2 + $0x78] sm:$0xff] %vm150, %v101
    %167 = vst.msk [vmem:[#allocation2 + $0x80] sm:$0xff] %vm150, %v102
    %168 = vst.msk [vmem:[#allocation2 + $0x88] sm:$0xff] %vm150, %v103
    %169 = vst.msk [vmem:[#allocation2 + $0x90] sm:$0xff] %vm150, %v104
    %170 = vst.msk [vmem:[#allocation2 + $0x98] sm:$0xff] %vm150, %v105
    %171 = vst.msk [vmem:[#allocation2 + $0xa0] sm:$0xff] %vm150, %v106
    %172 = vst.msk [vmem:[#allocation2 + $0xa8] sm:$0xff] %vm150, %v107
    %173 = vst.msk [vmem:[#allocation2 + $0xb0] sm:$0xff] %vm150, %v108
    %174 = vst.msk [vmem:[#allocation2 + $0xb8] sm:$0xff] %vm150, %v109
    %175 = vst.msk [vmem:[#allocation2 + $0xc0] sm:$0xff] %vm150, %v110
    %176 = vst.msk [vmem:[#allocation2 + $0xc8] sm:$0xff] %vm150, %v111
    %177 = vst.msk [vmem:[#allocation2 + $0xd0] sm:$0xff] %vm150, %v112
    %178 = vst.msk [vmem:[#allocation2 + $0xd8] sm:$0xff] %vm150, %v113
    %179 = vst.msk [vmem:[#allocation2 + $0xe0] sm:$0xff] %vm150, %v114
    %180 = vst.msk [vmem:[#allocation2 + $0xe8] sm:$0xff] %vm150, %v115
    %181 = vst.msk [vmem:[#allocation2 + $0xf0] sm:$0xff] %vm150, %v116
    %182 = vst.msk [vmem:[#allocation2 + $0xf8] sm:$0xff] %vm150, %v117
    %183 = vst.msk [vmem:[#allocation2 + $0x100] sm:$0xff] %vm150, %v118
    %184 = vst.msk [vmem:[#allocation2 + $0x108] sm:$0xff] %vm150, %v119
    %185 = vst.msk [vmem:[#allocation2 + $0x110] sm:$0xff] %vm150, %v120
    %186 = vst.msk [vmem:[#allocation2 + $0x118] sm:$0xff] %vm150, %v121
    %187 = vst.msk [vmem:[#allocation2 + $0x120] sm:$0xff] %vm150, %v122
    %188 = vst.msk [vmem:[#allocation2 + $0x128] sm:$0xff] %vm150, %v123
    %189 = vst.msk [vmem:[#allocation2 + $0x130] sm:$0xff] %vm150, %v124
    %190 = vst.msk [vmem:[#allocation2 + $0x138] sm:$0xff] %vm150, %v125
    %191 = vst.msk [vmem:[#allocation2 + $0x140] sm:$0xff] %vm150, %v126
    %192 = vst.msk [vmem:[#allocation2 + $0x148] sm:$0xff] %vm150, %v127
    %193 = vst.msk [vmem:[#allocation2 + $0x150] sm:$0xff] %vm150, %v128
    %194 = vst.msk [vmem:[#allocation2 + $0x158] sm:$0xff] %vm150, %v129
    %195 = vst.msk [vmem:[#allocation2 + $0x160] sm:$0xff] %vm150, %v130
    %196 = vst.msk [vmem:[#allocation2 + $0x168] sm:$0xff] %vm150, %v131
    %197 = vst.msk [vmem:[#allocation2 + $0x170] sm:$0xff] %vm150, %v132
    %198 = vst.msk [vmem:[#allocation2 + $0x178] sm:$0xff] %vm150, %v133
    %199 = vst.msk [vmem:[#allocation2 + $0x180] sm:$0xff] %vm150, %v134
    %200 = vst.msk [vmem:[#allocation2 + $0x188] sm:$0xff] %vm150, %v135
    %201 = vst.msk [vmem:[#allocation2 + $0x190] sm:$0xff] %vm150, %v136
    %202 = vst.msk [vmem:[#allocation2 + $0x198] sm:$0xff] %vm150, %v137
    %203 = vst.msk [vmem:[#allocation2 + $0x1a0] sm:$0xff] %vm150, %v138
    %204 = vst.msk [vmem:[#allocation2 + $0x1a8] sm:$0xff] %vm150, %v139
    %205 = vst.msk [vmem:[#allocation2 + $0x1b0] sm:$0xff] %vm150, %v140
    %206 = vst.msk [vmem:[#allocation2 + $0x1b8] sm:$0xff] %vm150, %v141
    %207 = vst.msk [vmem:[#allocation2 + $0x1c0] sm:$0xff] %vm150, %v142
    %208 = vst.msk [vmem:[#allocation2 + $0x1c8] sm:$0xff] %vm150, %v143
    %209 = vst.msk [vmem:[#allocation2 + $0x1d0] sm:$0xff] %vm150, %v144
    %210 = vst.msk [vmem:[#allocation2 + $0x1d8] sm:$0xff] %vm150, %v145
    %211 = vst.msk [vmem:[#allocation2 + $0x1e0] sm:$0xff] %vm150, %v146
    %212 = vst.msk [vmem:[#allocation2 + $0x1e8] sm:$0xff] %vm150, %v147
    %213 = vst.msk [vmem:[#allocation2 + $0x1f0] sm:$0xff] %vm150, %v148
    %214 = vst.msk [vmem:[#allocation2 + $0x1f8] sm:$0xff] %vm150, %v149
    %v215 = vld [vmem:[#allocation2] sm:$0xff]
    %v216 = vld [vmem:[#allocation2 + $0x8] sm:$0xff]
    %v217 = vld [vmem:[#allocation2 + $0x10] sm:$0xff]
    %v218 = vld [vmem:[#allocation2 + $0x18] sm:$0xff]
    %v219 = vld [vmem:[#allocation2 + $0x20] sm:$0xff]
    %v220 = vld [vmem:[#allocation2 + $0x28] sm:$0xff]
    %v221 = vld [vmem:[#allocation2 + $0x30] sm:$0xff]
    %v222 = vld [vmem:[#allocation2 + $0x38] sm:$0xff]
    %v223 = vld [vmem:[#allocation2 + $0x40] sm:$0xff]
    %v224 = vld [vmem:[#allocation2 + $0x48] sm:$0xff]
    %v225 = vld [vmem:[#allocation2 + $0x50] sm:$0xff]
    %v226 = vld [vmem:[#allocation2 + $0x58] sm:$0xff]
    %v227 = vld [vmem:[#allocation2 + $0x60] sm:$0xff]
    %v228 = vld [vmem:[#allocation2 + $0x68] sm:$0xff]
    %v229 = vld [vmem:[#allocation2 + $0x70] sm:$0xff]
    %v230 = vld [vmem:[#allocation2 + $0x78] sm:$0xff]
    %v231 = vld [vmem:[#allocation2 + $0x80] sm:$0xff]
    %v232 = vld [vmem:[#allocation2 + $0x88] sm:$0xff]
    %v233 = vld [vmem:[#allocation2 + $0x90] sm:$0xff]
    %v234 = vld [vmem:[#allocation2 + $0x98] sm:$0xff]
    %v235 = vld [vmem:[#allocation2 + $0xa0] sm:$0xff]
    %v236 = vld [vmem:[#allocation2 + $0xa8] sm:$0xff]
    %v237 = vld [vmem:[#allocation2 + $0xb0] sm:$0xff]
    %v238 = vld [vmem:[#allocation2 + $0xb8] sm:$0xff]
    %v239 = vld [vmem:[#allocation2 + $0xc0] sm:$0xff]
    %v240 = vld [vmem:[#allocation2 + $0xc8] sm:$0xff]
    %v241 = vld [vmem:[#allocation2 + $0xd0] sm:$0xff]
    %v242 = vld [vmem:[#allocation2 + $0xd8] sm:$0xff]
    %v243 = vld [vmem:[#allocation2 + $0xe0] sm:$0xff]
    %v244 = vld [vmem:[#allocation2 + $0xe8] sm:$0xff]
    %v245 = vld [vmem:[#allocation2 + $0xf0] sm:$0xff]
    %v246 = vld [vmem:[#allocation2 + $0xf8] sm:$0xff]
    %v247 = vld [vmem:[#allocation2 + $0x100] sm:$0xff]
    %v248 = vld [vmem:[#allocation2 + $0x108] sm:$0xff]
    %v249 = vld [vmem:[#allocation2 + $0x110] sm:$0xff]
    %v250 = vld [vmem:[#allocation2 + $0x118] sm:$0xff]
    %v251 = vld [vmem:[#allocation2 + $0x120] sm:$0xff]
    %v252 = vld [vmem:[#allocation2 + $0x128] sm:$0xff]
    %v253 = vld [vmem:[#allocation2 + $0x130] sm:$0xff]
    %v254 = vld [vmem:[#allocation2 + $0x138] sm:$0xff]
    %v255 = vld [vmem:[#allocation2 + $0x140] sm:$0xff]
    %v256 = vld [vmem:[#allocation2 + $0x148] sm:$0xff]
    %v257 = vld [vmem:[#allocation2 + $0x150] sm:$0xff]
    %v258 = vld [vmem:[#allocation2 + $0x158] sm:$0xff]
    %v259 = vld [vmem:[#allocation2 + $0x160] sm:$0xff]
    %v260 = vld [vmem:[#allocation2 + $0x168] sm:$0xff]
    %v261 = vld [vmem:[#allocation2 + $0x170] sm:$0xff]
    %v262 = vld [vmem:[#allocation2 + $0x178] sm:$0xff]
    %v263 = vld [vmem:[#allocation2 + $0x180] sm:$0xff]
    %v264 = vld [vmem:[#allocation2 + $0x188] sm:$0xff]
    %v265 = vld [vmem:[#allocation2 + $0x190] sm:$0xff]
    %v266 = vld [vmem:[#allocation2 + $0x198] sm:$0xff]
    %v267 = vld [vmem:[#allocation2 + $0x1a0] sm:$0xff]
    %v268 = vld [vmem:[#allocation2 + $0x1a8] sm:$0xff]
    %v269 = vld [vmem:[#allocation2 + $0x1b0] sm:$0xff]
    %v270 = vld [vmem:[#allocation2 + $0x1b8] sm:$0xff]
    %v271 = vld [vmem:[#allocation2 + $0x1c0] sm:$0xff]
    %v272 = vld [vmem:[#allocation2 + $0x1c8] sm:$0xff]
    %v273 = vld [vmem:[#allocation2 + $0x1d0] sm:$0xff]
    %v274 = vld [vmem:[#allocation2 + $0x1d8] sm:$0xff]
    %v275 = vld [vmem:[#allocation2 + $0x1e0] sm:$0xff]
    %v276 = vld [vmem:[#allocation2 + $0x1e8] sm:$0xff]
    %v277 = vld [vmem:[#allocation2 + $0x1f0] sm:$0xff]
    %v278 = vld [vmem:[#allocation2 + $0x1f8] sm:$0xff]
    %v279 = vld [vmem:[%s1] sm:$0xf]
    %v280 = vld [vmem:[%s1 + $0x4] sm:$0xf]
    %v281 = vld [vmem:[%s1 + $0x8] sm:$0xf]
    %v282 = vld [vmem:[%s1 + $0xc] sm:$0xf]
    %v283 = vld [vmem:[%s1 + $0x10] sm:$0xf]
    %v284 = vld [vmem:[%s1 + $0x14] sm:$0xf]
    %v285 = vld [vmem:[%s1 + $0x18] sm:$0xf]
    %v286 = vld [vmem:[%s1 + $0x1c] sm:$0xf]
    %v287 = vld [vmem:[%s1 + $0x20] sm:$0xf]
    %v288 = vld [vmem:[%s1 + $0x24] sm:$0xf]
    %v289 = vld [vmem:[%s1 + $0x28] sm:$0xf]
    %v290 = vld [vmem:[%s1 + $0x2c] sm:$0xf]
    %v291 = vld [vmem:[%s1 + $0x30] sm:$0xf]
    %v292 = vld [vmem:[%s1 + $0x34] sm:$0xf]
    %v293 = vld [vmem:[%s1 + $0x38] sm:$0xf]
    %v294 = vld [vmem:[%s1 + $0x3c] sm:$0xf]
    %v295 = vld [vmem:[%s2] sm:$0x1]
    %v296 = vpack.c.bf16 %v216, %v215
    %v297 = vpack.c.bf16 %v218, %v217
    %v298 = vpack.c.bf16 %v220, %v219
    %v299 = vpack.c.bf16 %v222, %v221
    %v300 = vpack.c.bf16 %v224, %v223
    %v301 = vpack.c.bf16 %v226, %v225
    %v302 = vpack.c.bf16 %v228, %v227
    %v303 = vpack.c.bf16 %v230, %v229
    %v304 = vpack.c.bf16 %v232, %v231
    %v305 = vpack.c.bf16 %v234, %v233
    %v306 = vpack.c.bf16 %v236, %v235
    %v307 = vpack.c.bf16 %v238, %v237
    %v308 = vpack.c.bf16 %v240, %v239
    %v309 = vpack.c.bf16 %v242, %v241
    %v310 = vpack.c.bf16 %v244, %v243
    %v311 = vpack.c.bf16 %v246, %v245
    %v312 = vpack.c.bf16 %v248, %v247
    %v313 = vpack.c.bf16 %v250, %v249
    %v314 = vpack.c.bf16 %v252, %v251
    %v315 = vpack.c.bf16 %v254, %v253
    %v316 = vpack.c.bf16 %v256, %v255
    %v317 = vpack.c.bf16 %v258, %v257
    %v318 = vpack.c.bf16 %v260, %v259
    %v319 = vpack.c.bf16 %v262, %v261
    %v320 = vpack.c.bf16 %v264, %v263
    %v321 = vpack.c.bf16 %v266, %v265
    %v322 = vpack.c.bf16 %v268, %v267
    %v323 = vpack.c.bf16 %v270, %v269
    %v324 = vpack.c.bf16 %v272, %v271
    %v325 = vpack.c.bf16 %v274, %v273
    %v326 = vpack.c.bf16 %v276, %v275
    %v327 = vpack.c.bf16 %v278, %v277
    %v329 = vlaneseq
    %v330 = vshrl.u32 %v329, 7
    %v331 = vsub.s32 0, %v330
    %v332 = vrot.slane %v295, %v331
    %v350 = vunpack.c.l.b16 %v279
    %v351 = vunpack.c.l.b16 %v280
    %v352 = vunpack.c.l.b16 %v281
    %v353 = vunpack.c.l.b16 %v282
    %v354 = vunpack.c.l.b16 %v283
    %v355 = vunpack.c.l.b16 %v284
    %v356 = vunpack.c.l.b16 %v285
    %v357 = vunpack.c.l.b16 %v286
    %v358 = vunpack.c.l.b16 %v287
    %v359 = vunpack.c.l.b16 %v288
    %v360 = vunpack.c.l.b16 %v289
    %v361 = vunpack.c.l.b16 %v290
    %v362 = vunpack.c.l.b16 %v291
    %v363 = vunpack.c.l.b16 %v292
    %v364 = vunpack.c.l.b16 %v293
    %v365 = vunpack.c.l.b16 %v294
    %v366 = vpack.c.b16 %v351, %v350
    %v367 = vpack.c.b16 %v353, %v352
    %v368 = vpack.c.b16 %v355, %v354
    %v369 = vpack.c.b16 %v357, %v356
    %v370 = vpack.c.b16 %v359, %v358
    %v371 = vpack.c.b16 %v361, %v360
    %v372 = vpack.c.b16 %v363, %v362
    %v373 = vpack.c.b16 %v365, %v364
    %382 = vmatprep.subr.bf16.mxu0 0
    %383 = vmatpush1.bf16.msra.mxu0 %v366
    %384 = vmatprep.subr.bf16.mxu0 0
    %385 = vmatpush1.bf16.msra.mxu0 %v367
    %386 = vmatprep.subr.bf16.mxu0 0
    %387 = vmatpush1.bf16.msra.mxu0 %v368
    %388 = vmatprep.subr.bf16.mxu0 0
    %389 = vmatpush1.bf16.msra.mxu0 %v369
    %390 = vmatprep.subr.bf16.mxu0 0
    %391 = vmatpush1.bf16.msra.mxu0 %v370
    %392 = vmatprep.subr.bf16.mxu0 0
    %393 = vmatpush1.bf16.msra.mxu0 %v371
    %394 = vmatprep.subr.bf16.mxu0 0
    %395 = vmatpush1.bf16.msra.mxu0 %v372
    %396 = vmatprep.subr.bf16.mxu0 0
    %397 = vmatpush1.bf16.msra.mxu0 %v373
    %398 = vmatprep.subr.bf16.mxu0 0
    %399 = vmatpush1.bf16.msra.mxu0 0
    %400 = vmatprep.subr.bf16.mxu0 0
    %401 = vmatpush1.bf16.msra.mxu0 0
    %402 = vmatprep.subr.bf16.mxu0 0
    %403 = vmatpush1.bf16.msra.mxu0 0
    %404 = vmatprep.subr.bf16.mxu0 0
    %405 = vmatpush1.bf16.msra.mxu0 0
    %406 = vmatprep.subr.bf16.mxu0 0
    %407 = vmatpush1.bf16.msra.mxu0 0
    %408 = vmatprep.subr.bf16.mxu0 0
    %409 = vmatpush1.bf16.msra.mxu0 0
    %410 = vmatprep.subr.bf16.mxu0 0
    %411 = vmatpush1.bf16.msra.mxu0 0
    %412 = vmatprep.subr.bf16.mxu0 0
    %413 = vmatpush1.bf16.msra.mxu0 0
    %414 = vmatprep.mubr.bf16.mxu0 0
    %415 = vmatmul.mubr.bf16.gmra.mrb[0].mxu0 %v296
    %v416 = vpop.f32.mrb[0].mxu0
    %v417 = vadd.f32 %v332, %v416
    %v418 = vpop.f32.mrb[0].mxu0
    %v419 = vpop.f32.mrb[0].mxu0
    %v420 = vadd.f32 %v332, %v419
    %v421 = vpop.f32.mrb[0].mxu0
    %422 = vmatprep.mubr.bf16.mxu0 0
    %423 = vmatmul.mubr.bf16.gmra.mrb[0].mxu0 %v297
    %v424 = vpop.f32.mrb[0].mxu0
    %v425 = vadd.f32 %v332, %v424
    %v426 = vpop.f32.mrb[0].mxu0
    %v427 = vpop.f32.mrb[0].mxu0
    %v428 = vadd.f32 %v332, %v427
    %v429 = vpop.f32.mrb[0].mxu0
    %430 = vmatprep.mubr.bf16.mxu0 0
    %431 = vmatmul.mubr.bf16.gmra.mrb[0].mxu0 %v298
    %v432 = vpop.f32.mrb[0].mxu0
    %v433 = vadd.f32 %v332, %v432
    %v434 = vpop.f32.mrb[0].mxu0
    %v435 = vpop.f32.mrb[0].mxu0
    %v436 = vadd.f32 %v332, %v435
    %v437 = vpop.f32.mrb[0].mxu0
    %438 = vmatprep.mubr.bf16.mxu0 0
    %439 = vmatmul.mubr.bf16.gmra.mrb[0].mxu0 %v299
    %v440 = vpop.f32.mrb[0].mxu0
    %v441 = vadd.f32 %v332, %v440
    %v442 = vpop.f32.mrb[0].mxu0
    %v443 = vpop.f32.mrb[0].mxu0
    %v444 = vadd.f32 %v332, %v443
    %v445 = vpop.f32.mrb[0].mxu0
    %446 = vmatprep.mubr.bf16.mxu0 0
    %447 = vmatmul.mubr.bf16.gmra.mrb[0].mxu0 %v300
    %v448 = vpop.f32.mrb[0].mxu0
    %v449 = vadd.f32 %v332, %v448
    %v450 = vpop.f32.mrb[0].mxu0
    %v451 = vpop.f32.mrb[0].mxu0
    %v452 = vadd.f32 %v332, %v451
    %v453 = vpop.f32.mrb[0].mxu0
    %454 = vmatprep.mubr.bf16.mxu0 0
    %455 = vmatmul.mubr.bf16.gmra.mrb[0].mxu0 %v301
    %v456 = vpop.f32.mrb[0].mxu0
    %v457 = vadd.f32 %v332, %v456
    %v458 = vpop.f32.mrb[0].mxu0
    %v459 = vpop.f32.mrb[0].mxu0
    %v460 = vadd.f32 %v332, %v459
    %v461 = vpop.f32.mrb[0].mxu0
    %462 = vmatprep.mubr.bf16.mxu0 0
    %463 = vmatmul.mubr.bf16.gmra.mrb[0].mxu0 %v302
    %v464 = vpop.f32.mrb[0].mxu0
    %v465 = vadd.f32 %v332, %v464
    %v466 = vpop.f32.mrb[0].mxu0
    %v467 = vpop.f32.mrb[0].mxu0
    %v468 = vadd.f32 %v332, %v467
    %v469 = vpop.f32.mrb[0].mxu0
    %470 = vmatprep.mubr.bf16.mxu0 0
    %471 = vmatmul.mubr.bf16.gmra.mrb[0].mxu0 %v303
    %v472 = vpop.f32.mrb[0].mxu0
    %v473 = vadd.f32 %v332, %v472
    %v474 = vpop.f32.mrb[0].mxu0
    %v475 = vpop.f32.mrb[0].mxu0
    %v476 = vadd.f32 %v332, %v475
    %v477 = vpop.f32.mrb[0].mxu0
    %478 = vmatprep.mubr.bf16.mxu0 0
    %479 = vmatmul.mubr.bf16.gmra.mrb[0].mxu0 %v304
    %v480 = vpop.f32.mrb[0].mxu0
    %v481 = vadd.f32 %v332, %v480
    %v482 = vpop.f32.mrb[0].mxu0
    %v483 = vpop.f32.mrb[0].mxu0
    %v484 = vadd.f32 %v332, %v483
    %v485 = vpop.f32.mrb[0].mxu0
    %486 = vmatprep.mubr.bf16.mxu0 0
    %487 = vmatmul.mubr.bf16.gmra.mrb[0].mxu0 %v305
    %v488 = vpop.f32.mrb[0].mxu0
    %v489 = vadd.f32 %v332, %v488
    %v490 = vpop.f32.mrb[0].mxu0
    %v491 = vpop.f32.mrb[0].mxu0
    %v492 = vadd.f32 %v332, %v491
    %v493 = vpop.f32.mrb[0].mxu0
    %494 = vmatprep.mubr.bf16.mxu0 0
    %495 = vmatmul.mubr.bf16.gmra.mrb[0].mxu0 %v306
    %v496 = vpop.f32.mrb[0].mxu0
    %v497 = vadd.f32 %v332, %v496
    %v498 = vpop.f32.mrb[0].mxu0
    %v499 = vpop.f32.mrb[0].mxu0
    %v500 = vadd.f32 %v332, %v499
    %v501 = vpop.f32.mrb[0].mxu0
    %502 = vmatprep.mubr.bf16.mxu0 0
    %503 = vmatmul.mubr.bf16.gmra.mrb[0].mxu0 %v307
    %v504 = vpop.f32.mrb[0].mxu0
    %v505 = vadd.f32 %v332, %v504
    %v506 = vpop.f32.mrb[0].mxu0
    %v507 = vpop.f32.mrb[0].mxu0
    %v508 = vadd.f32 %v332, %v507
    %v509 = vpop.f32.mrb[0].mxu0
    %510 = vmatprep.mubr.bf16.mxu0 0
    %511 = vmatmul.mubr.bf16.gmra.mrb[0].mxu0 %v308
    %v512 = vpop.f32.mrb[0].mxu0
    %v513 = vadd.f32 %v332, %v512
    %v514 = vpop.f32.mrb[0].mxu0
    %v515 = vpop.f32.mrb[0].mxu0
    %v516 = vadd.f32 %v332, %v515
    %v517 = vpop.f32.mrb[0].mxu0
    %518 = vmatprep.mubr.bf16.mxu0 0
    %519 = vmatmul.mubr.bf16.gmra.mrb[0].mxu0 %v309
    %v520 = vpop.f32.mrb[0].mxu0
    %v521 = vadd.f32 %v332, %v520
    %v522 = vpop.f32.mrb[0].mxu0
    %v523 = vpop.f32.mrb[0].mxu0
    %v524 = vadd.f32 %v332, %v523
    %v525 = vpop.f32.mrb[0].mxu0
    %526 = vmatprep.mubr.bf16.mxu0 0
    %527 = vmatmul.mubr.bf16.gmra.mrb[0].mxu0 %v310
    %v528 = vpop.f32.mrb[0].mxu0
    %v529 = vadd.f32 %v332, %v528
    %v530 = vpop.f32.mrb[0].mxu0
    %v531 = vpop.f32.mrb[0].mxu0
    %v532 = vadd.f32 %v332, %v531
    %v533 = vpop.f32.mrb[0].mxu0
    %534 = vmatprep.mubr.bf16.mxu0 0
    %535 = vmatmul.mubr.bf16.gmra.mrb[0].mxu0 %v311
    %v536 = vpop.f32.mrb[0].mxu0
    %v537 = vadd.f32 %v332, %v536
    %v538 = vpop.f32.mrb[0].mxu0
    %v539 = vpop.f32.mrb[0].mxu0
    %v540 = vadd.f32 %v332, %v539
    %v541 = vpop.f32.mrb[0].mxu0
    %542 = vmatprep.mubr.bf16.mxu0 0
    %543 = vmatmul.mubr.bf16.gmra.mrb[0].mxu0 %v312
    %v544 = vpop.f32.mrb[0].mxu0
    %v545 = vadd.f32 %v332, %v544
    %v546 = vpop.f32.mrb[0].mxu0
    %v547 = vpop.f32.mrb[0].mxu0
    %v548 = vadd.f32 %v332, %v547
    %v549 = vpop.f32.mrb[0].mxu0
    %550 = vmatprep.mubr.bf16.mxu0 0
    %551 = vmatmul.mubr.bf16.gmra.mrb[0].mxu0 %v313
    %v552 = vpop.f32.mrb[0].mxu0
    %v553 = vadd.f32 %v332, %v552
    %v554 = vpop.f32.mrb[0].mxu0
    %v555 = vpop.f32.mrb[0].mxu0
    %v556 = vadd.f32 %v332, %v555
    %v557 = vpop.f32.mrb[0].mxu0
    %558 = vmatprep.mubr.bf16.mxu0 0
    %559 = vmatmul.mubr.bf16.gmra.mrb[0].mxu0 %v314
    %v560 = vpop.f32.mrb[0].mxu0
    %v561 = vadd.f32 %v332, %v560
    %v562 = vpop.f32.mrb[0].mxu0
    %v563 = vpop.f32.mrb[0].mxu0
    %v564 = vadd.f32 %v332, %v563
    %v565 = vpop.f32.mrb[0].mxu0
    %566 = vmatprep.mubr.bf16.mxu0 0
    %567 = vmatmul.mubr.bf16.gmra.mrb[0].mxu0 %v315
    %v568 = vpop.f32.mrb[0].mxu0
    %v569 = vadd.f32 %v332, %v568
    %v570 = vpop.f32.mrb[0].mxu0
    %v571 = vpop.f32.mrb[0].mxu0
    %v572 = vadd.f32 %v332, %v571
    %v573 = vpop.f32.mrb[0].mxu0
    %574 = vmatprep.mubr.bf16.mxu0 0
    %575 = vmatmul.mubr.bf16.gmra.mrb[0].mxu0 %v316
    %v576 = vpop.f32.mrb[0].mxu0
    %v577 = vadd.f32 %v332, %v576
    %v578 = vpop.f32.mrb[0].mxu0
    %v579 = vpop.f32.mrb[0].mxu0
    %v580 = vadd.f32 %v332, %v579
    %v581 = vpop.f32.mrb[0].mxu0
    %582 = vmatprep.mubr.bf16.mxu0 0
    %583 = vmatmul.mubr.bf16.gmra.mrb[0].mxu0 %v317
    %v584 = vpop.f32.mrb[0].mxu0
    %v585 = vadd.f32 %v332, %v584
    %v586 = vpop.f32.mrb[0].mxu0
    %v587 = vpop.f32.mrb[0].mxu0
    %v588 = vadd.f32 %v332, %v587
    %v589 = vpop.f32.mrb[0].mxu0
    %590 = vmatprep.mubr.bf16.mxu0 0
    %591 = vmatmul.mubr.bf16.gmra.mrb[0].mxu0 %v318
    %v592 = vpop.f32.mrb[0].mxu0
    %v593 = vadd.f32 %v332, %v592
    %v594 = vpop.f32.mrb[0].mxu0
    %v595 = vpop.f32.mrb[0].mxu0
    %v596 = vadd.f32 %v332, %v595
    %v597 = vpop.f32.mrb[0].mxu0
    %598 = vmatprep.mubr.bf16.mxu0 0
    %599 = vmatmul.mubr.bf16.gmra.mrb[0].mxu0 %v319
    %v600 = vpop.f32.mrb[0].mxu0
    %v601 = vadd.f32 %v332, %v600
    %v602 = vpop.f32.mrb[0].mxu0
    %v603 = vpop.f32.mrb[0].mxu0
    %v604 = vadd.f32 %v332, %v603
    %v605 = vpop.f32.mrb[0].mxu0
    %606 = vmatprep.mubr.bf16.mxu0 0
    %607 = vmatmul.mubr.bf16.gmra.mrb[0].mxu0 %v320
    %v608 = vpop.f32.mrb[0].mxu0
    %v609 = vadd.f32 %v332, %v608
    %v610 = vpop.f32.mrb[0].mxu0
    %v611 = vpop.f32.mrb[0].mxu0
    %v612 = vadd.f32 %v332, %v611
    %v613 = vpop.f32.mrb[0].mxu0
    %614 = vmatprep.mubr.bf16.mxu0 0
    %615 = vmatmul.mubr.bf16.gmra.mrb[0].mxu0 %v321
    %v616 = vpop.f32.mrb[0].mxu0
    %v617 = vadd.f32 %v332, %v616
    %v618 = vpop.f32.mrb[0].mxu0
    %v619 = vpop.f32.mrb[0].mxu0
    %v620 = vadd.f32 %v332, %v619
    %v621 = vpop.f32.mrb[0].mxu0
    %622 = vmatprep.mubr.bf16.mxu0 0
    %623 = vmatmul.mubr.bf16.gmra.mrb[0].mxu0 %v322
    %v624 = vpop.f32.mrb[0].mxu0
    %v625 = vadd.f32 %v332, %v624
    %v626 = vpop.f32.mrb[0].mxu0
    %v627 = vpop.f32.mrb[0].mxu0
    %v628 = vadd.f32 %v332, %v627
    %v629 = vpop.f32.mrb[0].mxu0
    %630 = vmatprep.mubr.bf16.mxu0 0
    %631 = vmatmul.mubr.bf16.gmra.mrb[0].mxu0 %v323
    %v632 = vpop.f32.mrb[0].mxu0
    %v633 = vadd.f32 %v332, %v632
    %v634 = vpop.f32.mrb[0].mxu0
    %v635 = vpop.f32.mrb[0].mxu0
    %v636 = vadd.f32 %v332, %v635
    %v637 = vpop.f32.mrb[0].mxu0
    %638 = vmatprep.mubr.bf16.mxu0 0
    %639 = vmatmul.mubr.bf16.gmra.mrb[0].mxu0 %v324
    %v640 = vpop.f32.mrb[0].mxu0
    %v641 = vadd.f32 %v332, %v640
    %v642 = vpop.f32.mrb[0].mxu0
    %v643 = vpop.f32.mrb[0].mxu0
    %v644 = vadd.f32 %v332, %v643
    %v645 = vpop.f32.mrb[0].mxu0
    %646 = vmatprep.mubr.bf16.mxu0 0
    %647 = vmatmul.mubr.bf16.gmra.mrb[0].mxu0 %v325
    %v648 = vpop.f32.mrb[0].mxu0
    %v649 = vadd.f32 %v332, %v648
    %v650 = vpop.f32.mrb[0].mxu0
    %v651 = vpop.f32.mrb[0].mxu0
    %v652 = vadd.f32 %v332, %v651
    %v653 = vpop.f32.mrb[0].mxu0
    %654 = vmatprep.mubr.bf16.mxu0 0
    %655 = vmatmul.mubr.bf16.gmra.mrb[0].mxu0 %v326
    %v656 = vpop.f32.mrb[0].mxu0
    %v657 = vadd.f32 %v332, %v656
    %v658 = vpop.f32.mrb[0].mxu0
    %v659 = vpop.f32.mrb[0].mxu0
    %v660 = vadd.f32 %v332, %v659
    %v661 = vpop.f32.mrb[0].mxu0
    %662 = vmatprep.mubr.bf16.mxu0 0
    %663 = vmatmul.mubr.bf16.gmra.mrb[0].mxu0 %v327
    %v664 = vpop.f32.mrb[0].mxu0
    %v665 = vadd.f32 %v332, %v664
    %v666 = vpop.f32.mrb[0].mxu0
    %v667 = vpop.f32.mrb[0].mxu0
    %v668 = vadd.f32 %v332, %v667
    %v669 = vpop.f32.mrb[0].mxu0
    %670 = vdwg.mxu0
    %v671 = vtanh.pop %v417
    %v672 = vtanh.pop %v420
    %v673 = vtanh.pop %v425
    %v674 = vtanh.pop %v428
    %v675 = vtanh.pop %v433
    %v676 = vtanh.pop %v436
    %v677 = vtanh.pop %v441
    %v678 = vtanh.pop %v444
    %v679 = vtanh.pop %v449
    %v680 = vtanh.pop %v452
    %v681 = vtanh.pop %v457
    %v682 = vtanh.pop %v460
    %v683 = vtanh.pop %v465
    %v684 = vtanh.pop %v468
    %v685 = vtanh.pop %v473
    %v686 = vtanh.pop %v476
    %v687 = vtanh.pop %v481
    %v688 = vtanh.pop %v484
    %v689 = vtanh.pop %v489
    %v690 = vtanh.pop %v492
    %v691 = vtanh.pop %v497
    %v692 = vtanh.pop %v500
    %v693 = vtanh.pop %v505
    %v694 = vtanh.pop %v508
    %v695 = vtanh.pop %v513
    %v696 = vtanh.pop %v516
    %v697 = vtanh.pop %v521
    %v698 = vtanh.pop %v524
    %v699 = vtanh.pop %v529
    %v700 = vtanh.pop %v532
    %v701 = vtanh.pop %v537
    %v702 = vtanh.pop %v540
    %v703 = vtanh.pop %v545
    %v704 = vtanh.pop %v548
    %v705 = vtanh.pop %v553
    %v706 = vtanh.pop %v556
    %v707 = vtanh.pop %v561
    %v708 = vtanh.pop %v564
    %v709 = vtanh.pop %v569
    %v710 = vtanh.pop %v572
    %v711 = vtanh.pop %v577
    %v712 = vtanh.pop %v580
    %v713 = vtanh.pop %v585
    %v714 = vtanh.pop %v588
    %v715 = vtanh.pop %v593
    %v716 = vtanh.pop %v596
    %v717 = vtanh.pop %v601
    %v718 = vtanh.pop %v604
    %v719 = vtanh.pop %v609
    %v720 = vtanh.pop %v612
    %v721 = vtanh.pop %v617
    %v722 = vtanh.pop %v620
    %v723 = vtanh.pop %v625
    %v724 = vtanh.pop %v628
    %v725 = vtanh.pop %v633
    %v726 = vtanh.pop %v636
    %v727 = vtanh.pop %v641
    %v728 = vtanh.pop %v644
    %v729 = vtanh.pop %v649
    %v730 = vtanh.pop %v652
    %v731 = vtanh.pop %v657
    %v732 = vtanh.pop %v660
    %v733 = vtanh.pop %v665
    %v734 = vtanh.pop %v668
    %v735 = vadd.f32 %v671, %v215
    %v736 = vadd.f32 %v672, %v216
    %v737 = vadd.f32 %v673, %v217
    %v738 = vadd.f32 %v674, %v218
    %v739 = vadd.f32 %v675, %v219
    %v740 = vadd.f32 %v676, %v220
    %v741 = vadd.f32 %v677, %v221
    %v742 = vadd.f32 %v678, %v222
    %v743 = vadd.f32 %v679, %v223
    %v744 = vadd.f32 %v680, %v224
    %v745 = vadd.f32 %v681, %v225
    %v746 = vadd.f32 %v682, %v226
    %v747 = vadd.f32 %v683, %v227
    %v748 = vadd.f32 %v684, %v228
    %v749 = vadd.f32 %v685, %v229
    %v750 = vadd.f32 %v686, %v230
    %v751 = vadd.f32 %v687, %v231
    %v752 = vadd.f32 %v688, %v232
    %v753 = vadd.f32 %v689, %v233
    %v754 = vadd.f32 %v690, %v234
    %v755 = vadd.f32 %v691, %v235
    %v756 = vadd.f32 %v692, %v236
    %v757 = vadd.f32 %v693, %v237
    %v758 = vadd.f32 %v694, %v238
    %v759 = vadd.f32 %v695, %v239
    %v760 = vadd.f32 %v696, %v240
    %v761 = vadd.f32 %v697, %v241
    %v762 = vadd.f32 %v698, %v242
    %v763 = vadd.f32 %v699, %v243
    %v764 = vadd.f32 %v700, %v244
    %v765 = vadd.f32 %v701, %v245
    %v766 = vadd.f32 %v702, %v246
    %v767 = vadd.f32 %v703, %v247
    %v768 = vadd.f32 %v704, %v248
    %v769 = vadd.f32 %v705, %v249
    %v770 = vadd.f32 %v706, %v250
    %v771 = vadd.f32 %v707, %v251
    %v772 = vadd.f32 %v708, %v252
    %v773 = vadd.f32 %v709, %v253
    %v774 = vadd.f32 %v710, %v254
    %v775 = vadd.f32 %v711, %v255
    %v776 = vadd.f32 %v712, %v256
    %v777 = vadd.f32 %v713, %v257
    %v778 = vadd.f32 %v714, %v258
    %v779 = vadd.f32 %v715, %v259
    %v780 = vadd.f32 %v716, %v260
    %v781 = vadd.f32 %v717, %v261
    %v782 = vadd.f32 %v718, %v262
    %v783 = vadd.f32 %v719, %v263
    %v784 = vadd.f32 %v720, %v264
    %v785 = vadd.f32 %v721, %v265
    %v786 = vadd.f32 %v722, %v266
    %v787 = vadd.f32 %v723, %v267
    %v788 = vadd.f32 %v724, %v268
    %v789 = vadd.f32 %v725, %v269
    %v790 = vadd.f32 %v726, %v270
    %v791 = vadd.f32 %v727, %v271
    %v792 = vadd.f32 %v728, %v272
    %v793 = vadd.f32 %v729, %v273
    %v794 = vadd.f32 %v730, %v274
    %v795 = vadd.f32 %v731, %v275
    %v796 = vadd.f32 %v732, %v276
    %v797 = vadd.f32 %v733, %v277
    %v798 = vadd.f32 %v734, %v278
    %s799 = scalar_lea.vmem %s1, 64
    %v800 = vld [vmem:[%s799] sm:$0xf]
    %v801 = vld [vmem:[%s799 + $0x4] sm:$0xf]
    %v802 = vld [vmem:[%s799 + $0x8] sm:$0xf]
    %v803 = vld [vmem:[%s799 + $0xc] sm:$0xf]
    %v804 = vld [vmem:[%s799 + $0x10] sm:$0xf]
    %v805 = vld [vmem:[%s799 + $0x14] sm:$0xf]
    %v806 = vld [vmem:[%s799 + $0x18] sm:$0xf]
    %v807 = vld [vmem:[%s799 + $0x1c] sm:$0xf]
    %v808 = vld [vmem:[%s799 + $0x20] sm:$0xf]
    %v809 = vld [vmem:[%s799 + $0x24] sm:$0xf]
    %v810 = vld [vmem:[%s799 + $0x28] sm:$0xf]
    %v811 = vld [vmem:[%s799 + $0x2c] sm:$0xf]
    %v812 = vld [vmem:[%s799 + $0x30] sm:$0xf]
    %v813 = vld [vmem:[%s799 + $0x34] sm:$0xf]
    %v814 = vld [vmem:[%s799 + $0x38] sm:$0xf]
    %v815 = vld [vmem:[%s799 + $0x3c] sm:$0xf]
    %s816 = scalar_lea.vmem %s2, 1
    %v817 = vld [vmem:[%s816] sm:$0x1]
    %v818 = vpack.c.bf16 %v736, %v735
    %v819 = vpack.c.bf16 %v738, %v737
    %v820 = vpack.c.bf16 %v740, %v739
    %v821 = vpack.c.bf16 %v742, %v741
    %v822 = vpack.c.bf16 %v744, %v743
    %v823 = vpack.c.bf16 %v746, %v745
    %v824 = vpack.c.bf16 %v748, %v747
    %v825 = vpack.c.bf16 %v750, %v749
    %v826 = vpack.c.bf16 %v752, %v751
    %v827 = vpack.c.bf16 %v754, %v753
    %v828 = vpack.c.bf16 %v756, %v755
    %v829 = vpack.c.bf16 %v758, %v757
    %v830 = vpack.c.bf16 %v760, %v759
    %v831 = vpack.c.bf16 %v762, %v761
    %v832 = vpack.c.bf16 %v764, %v763
    %v833 = vpack.c.bf16 %v766, %v765
    %v834 = vpack.c.bf16 %v768, %v767
    %v835 = vpack.c.bf16 %v770, %v769
    %v836 = vpack.c.bf16 %v772, %v771
    %v837 = vpack.c.bf16 %v774, %v773
    %v838 = vpack.c.bf16 %v776, %v775
    %v839 = vpack.c.bf16 %v778, %v777
    %v840 = vpack.c.bf16 %v780, %v779
    %v841 = vpack.c.bf16 %v782, %v781
    %v842 = vpack.c.bf16 %v784, %v783
    %v843 = vpack.c.bf16 %v786, %v785
    %v844 = vpack.c.bf16 %v788, %v787
    %v845 = vpack.c.bf16 %v790, %v789
    %v846 = vpack.c.bf16 %v792, %v791
    %v847 = vpack.c.bf16 %v794, %v793
    %v848 = vpack.c.bf16 %v796, %v795
    %v849 = vpack.c.bf16 %v798, %v797
    %v851 = vlaneseq
    %v852 = vshrl.u32 %v851, 7
    %v853 = vsub.s32 0, %v852
    %v854 = vrot.slane %v817, %v853
    %v872 = vunpack.c.l.b16 %v800
    %v873 = vunpack.c.l.b16 %v801
    %v874 = vunpack.c.l.b16 %v802
    %v875 = vunpack.c.l.b16 %v803
    %v876 = vunpack.c.l.b16 %v804
    %v877 = vunpack.c.l.b16 %v805
    %v878 = vunpack.c.l.b16 %v806
    %v879 = vunpack.c.l.b16 %v807
    %v880 = vunpack.c.l.b16 %v808
    %v881 = vunpack.c.l.b16 %v809
    %v882 = vunpack.c.l.b16 %v810
    %v883 = vunpack.c.l.b16 %v811
    %v884 = vunpack.c.l.b16 %v812
    %v885 = vunpack.c.l.b16 %v813
    %v886 = vunpack.c.l.b16 %v814
    %v887 = vunpack.c.l.b16 %v815
    %v888 = vpack.c.b16 %v873, %v872
    %v889 = vpack.c.b16 %v875, %v874
    %v890 = vpack.c.b16 %v877, %v876
    %v891 = vpack.c.b16 %v879, %v878
    %v892 = vpack.c.b16 %v881, %v880
    %v893 = vpack.c.b16 %v883, %v882
    %v894 = vpack.c.b16 %v885, %v884
    %v895 = vpack.c.b16 %v887, %v886
    %904 = vmatprep.subr.bf16.mxu0 0
    %905 = vmatpush1.bf16.msra.mxu0 %v888
    %906 = vmatprep.subr.bf16.mxu0 0
    %907 = vmatpush1.bf16.msra.mxu0 %v889
    %908 = vmatprep.subr.bf16.mxu0 0
    %909 = vmatpush1.bf16.msra.mxu0 %v890
    %910 = vmatprep.subr.bf16.mxu0 0
    %911 = vmatpush1.bf16.msra.mxu0 %v891
    %912 = vmatprep.subr.bf16.mxu0 0
    %913 = vmatpush1.bf16.msra.mxu0 %v892
    %914 = vmatprep.subr.bf16.mxu0 0
    %915 = vmatpush1.bf16.msra.mxu0 %v893
    %916 = vmatprep.subr.bf16.mxu0 0
    %917 = vmatpush1.bf16.msra.mxu0 %v894
    %918 = vmatprep.subr.bf16.mxu0 0
    %919 = vmatpush1.bf16.msra.mxu0 %v895
    %920 = vmatprep.subr.bf16.mxu0 0
    %921 = vmatpush1.bf16.msra.mxu0 0
    %922 = vmatprep.subr.bf16.mxu0 0
    %923 = vmatpush1.bf16.msra.mxu0 0
    %924 = vmatprep.subr.bf16.mxu0 0
    %925 = vmatpush1.bf16.msra.mxu0 0
    %926 = vmatprep.subr.bf16.mxu0 0
    %927 = vmatpush1.bf16.msra.mxu0 0
    %928 = vmatprep.subr.bf16.mxu0 0
    %929 = vmatpush1.bf16.msra.mxu0 0
    %930 = vmatprep.subr.bf16.mxu0 0
    %931 = vmatpush1.bf16.msra.mxu0 0
    %932 = vmatprep.subr.bf16.mxu0 0
    %933 = vmatpush1.bf16.msra.mxu0 0
    %934 = vmatprep.subr.bf16.mxu0 0
    %935 = vmatpush1.bf16.msra.mxu0 0
    %936 = vmatprep.mubr.bf16.mxu0 0
    %937 = vmatmul.mubr.bf16.gmra.mrb[0].mxu0 %v818
    %v938 = vpop.f32.mrb[0].mxu0
    %v939 = vadd.f32 %v854, %v938
    %v940 = vpop.f32.mrb[0].mxu0
    %v941 = vpop.f32.mrb[0].mxu0
    %v942 = vadd.f32 %v854, %v941
    %v943 = vpop.f32.mrb[0].mxu0
    %944 = vmatprep.mubr.bf16.mxu0 0
    %945 = vmatmul.mubr.bf16.gmra.mrb[0].mxu0 %v819
    %v946 = vpop.f32.mrb[0].mxu0
    %v947 = vadd.f32 %v854, %v946
    %v948 = vpop.f32.mrb[0].mxu0
    %v949 = vpop.f32.mrb[0].mxu0
    %v950 = vadd.f32 %v854, %v949
    %v951 = vpop.f32.mrb[0].mxu0
    %952 = vmatprep.mubr.bf16.mxu0 0
    %953 = vmatmul.mubr.bf16.gmra.mrb[0].mxu0 %v820
    %v954 = vpop.f32.mrb[0].mxu0
    %v955 = vadd.f32 %v854, %v954
    %v956 = vpop.f32.mrb[0].mxu0
    %v957 = vpop.f32.mrb[0].mxu0
    %v958 = vadd.f32 %v854, %v957
    %v959 = vpop.f32.mrb[0].mxu0
    %960 = vmatprep.mubr.bf16.mxu0 0
    %961 = vmatmul.mubr.bf16.gmra.mrb[0].mxu0 %v821
    %v962 = vpop.f32.mrb[0].mxu0
    %v963 = vadd.f32 %v854, %v962
    %v964 = vpop.f32.mrb[0].mxu0
    %v965 = vpop.f32.mrb[0].mxu0
    %v966 = vadd.f32 %v854, %v965
    %v967 = vpop.f32.mrb[0].mxu0
    %968 = vmatprep.mubr.bf16.mxu0 0
    %969 = vmatmul.mubr.bf16.gmra.mrb[0].mxu0 %v822
    %v970 = vpop.f32.mrb[0].mxu0
    %v971 = vadd.f32 %v854, %v970
    %v972 = vpop.f32.mrb[0].mxu0
    %v973 = vpop.f32.mrb[0].mxu0
    %v974 = vadd.f32 %v854, %v973
    %v975 = vpop.f32.mrb[0].mxu0
    %976 = vmatprep.mubr.bf16.mxu0 0
    %977 = vmatmul.mubr.bf16.gmra.mrb[0].mxu0 %v823
    %v978 = vpop.f32.mrb[0].mxu0
    %v979 = vadd.f32 %v854, %v978
    %v980 = vpop.f32.mrb[0].mxu0
    %v981 = vpop.f32.mrb[0].mxu0
    %v982 = vadd.f32 %v854, %v981
    %v983 = vpop.f32.mrb[0].mxu0
    %984 = vmatprep.mubr.bf16.mxu0 0
    %985 = vmatmul.mubr.bf16.gmra.mrb[0].mxu0 %v824
    %v986 = vpop.f32.mrb[0].mxu0
    %v987 = vadd.f32 %v854, %v986
    %v988 = vpop.f32.mrb[0].mxu0
    %v989 = vpop.f32.mrb[0].mxu0
    %v990 = vadd.f32 %v854, %v989
    %v991 = vpop.f32.mrb[0].mxu0
    %992 = vmatprep.mubr.bf16.mxu0 0
    %993 = vmatmul.mubr.bf16.gmra.mrb[0].mxu0 %v825
    %v994 = vpop.f32.mrb[0].mxu0
    %v995 = vadd.f32 %v854, %v994
    %v996 = vpop.f32.mrb[0].mxu0
    %v997 = vpop.f32.mrb[0].mxu0
    %v998 = vadd.f32 %v854, %v997
    %v999 = vpop.f32.mrb[0].mxu0
    %1000 = vmatprep.mubr.bf16.mxu0 0
    %1001 = vmatmul.mubr.bf16.gmra.mrb[0].mxu0 %v826
    %v1002 = vpop.f32.mrb[0].mxu0
    %v1003 = vadd.f32 %v854, %v1002
    %v1004 = vpop.f32.mrb[0].mxu0
    %v1005 = vpop.f32.mrb[0].mxu0
    %v1006 = vadd.f32 %v854, %v1005
    %v1007 = vpop.f32.mrb[0].mxu0
    %1008 = vmatprep.mubr.bf16.mxu0 0
    %1009 = vmatmul.mubr.bf16.gmra.mrb[0].mxu0 %v827
    %v1010 = vpop.f32.mrb[0].mxu0
    %v1011 = vadd.f32 %v854, %v1010
    %v1012 = vpop.f32.mrb[0].mxu0
    %v1013 = vpop.f32.mrb[0].mxu0
    %v1014 = vadd.f32 %v854, %v1013
    %v1015 = vpop.f32.mrb[0].mxu0
    %1016 = vmatprep.mubr.bf16.mxu0 0
    %1017 = vmatmul.mubr.bf16.gmra.mrb[0].mxu0 %v828
    %v1018 = vpop.f32.mrb[0].mxu0
    %v1019 = vadd.f32 %v854, %v1018
    %v1020 = vpop.f32.mrb[0].mxu0
    %v1021 = vpop.f32.mrb[0].mxu0
    %v1022 = vadd.f32 %v854, %v1021
    %v1023 = vpop.f32.mrb[0].mxu0
    %1024 = vmatprep.mubr.bf16.mxu0 0
    %1025 = vmatmul.mubr.bf16.gmra.mrb[0].mxu0 %v829
    %v1026 = vpop.f32.mrb[0].mxu0
    %v1027 = vadd.f32 %v854, %v1026
    %v1028 = vpop.f32.mrb[0].mxu0
    %v1029 = vpop.f32.mrb[0].mxu0
    %v1030 = vadd.f32 %v854, %v1029
    %v1031 = vpop.f32.mrb[0].mxu0
    %1032 = vmatprep.mubr.bf16.mxu0 0
    %1033 = vmatmul.mubr.bf16.gmra.mrb[0].mxu0 %v830
    %v1034 = vpop.f32.mrb[0].mxu0
    %v1035 = vadd.f32 %v854, %v1034
    %v1036 = vpop.f32.mrb[0].mxu0
    %v1037 = vpop.f32.mrb[0].mxu0
    %v1038 = vadd.f32 %v854, %v1037
    %v1039 = vpop.f32.mrb[0].mxu0
    %1040 = vmatprep.mubr.bf16.mxu0 0
    %1041 = vmatmul.mubr.bf16.gmra.mrb[0].mxu0 %v831
    %v1042 = vpop.f32.mrb[0].mxu0
    %v1043 = vadd.f32 %v854, %v1042
    %v1044 = vpop.f32.mrb[0].mxu0
    %v1045 = vpop.f32.mrb[0].mxu0
    %v1046 = vadd.f32 %v854, %v1045
    %v1047 = vpop.f32.mrb[0].mxu0
    %1048 = vmatprep.mubr.bf16.mxu0 0
    %1049 = vmatmul.mubr.bf16.gmra.mrb[0].mxu0 %v832
    %v1050 = vpop.f32.mrb[0].mxu0
    %v1051 = vadd.f32 %v854, %v1050
    %v1052 = vpop.f32.mrb[0].mxu0
    %v1053 = vpop.f32.mrb[0].mxu0
    %v1054 = vadd.f32 %v854, %v1053
    %v1055 = vpop.f32.mrb[0].mxu0
    %1056 = vmatprep.mubr.bf16.mxu0 0
    %1057 = vmatmul.mubr.bf16.gmra.mrb[0].mxu0 %v833
    %v1058 = vpop.f32.mrb[0].mxu0
    %v1059 = vadd.f32 %v854, %v1058
    %v1060 = vpop.f32.mrb[0].mxu0
    %v1061 = vpop.f32.mrb[0].mxu0
    %v1062 = vadd.f32 %v854, %v1061
    %v1063 = vpop.f32.mrb[0].mxu0
    %1064 = vmatprep.mubr.bf16.mxu0 0
    %1065 = vmatmul.mubr.bf16.gmra.mrb[0].mxu0 %v834
    %v1066 = vpop.f32.mrb[0].mxu0
    %v1067 = vadd.f32 %v854, %v1066
    %v1068 = vpop.f32.mrb[0].mxu0
    %v1069 = vpop.f32.mrb[0].mxu0
    %v1070 = vadd.f32 %v854, %v1069
    %v1071 = vpop.f32.mrb[0].mxu0
    %1072 = vmatprep.mubr.bf16.mxu0 0
    %1073 = vmatmul.mubr.bf16.gmra.mrb[0].mxu0 %v835
    %v1074 = vpop.f32.mrb[0].mxu0
    %v1075 = vadd.f32 %v854, %v1074
    %v1076 = vpop.f32.mrb[0].mxu0
    %v1077 = vpop.f32.mrb[0].mxu0
    %v1078 = vadd.f32 %v854, %v1077
    %v1079 = vpop.f32.mrb[0].mxu0
    %1080 = vmatprep.mubr.bf16.mxu0 0
    %1081 = vmatmul.mubr.bf16.gmra.mrb[0].mxu0 %v836
    %v1082 = vpop.f32.mrb[0].mxu0
    %v1083 = vadd.f32 %v854, %v1082
    %v1084 = vpop.f32.mrb[0].mxu0
    %v1085 = vpop.f32.mrb[0].mxu0
    %v1086 = vadd.f32 %v854, %v1085
    %v1087 = vpop.f32.mrb[0].mxu0
    %1088 = vmatprep.mubr.bf16.mxu0 0
    %1089 = vmatmul.mubr.bf16.gmra.mrb[0].mxu0 %v837
    %v1090 = vpop.f32.mrb[0].mxu0
    %v1091 = vadd.f32 %v854, %v1090
    %v1092 = vpop.f32.mrb[0].mxu0
    %v1093 = vpop.f32.mrb[0].mxu0
    %v1094 = vadd.f32 %v854, %v1093
    %v1095 = vpop.f32.mrb[0].mxu0
    %1096 = vmatprep.mubr.bf16.mxu0 0
    %1097 = vmatmul.mubr.bf16.gmra.mrb[0].mxu0 %v838
    %v1098 = vpop.f32.mrb[0].mxu0
    %v1099 = vadd.f32 %v854, %v1098
    %v1100 = vpop.f32.mrb[0].mxu0
    %v1101 = vpop.f32.mrb[0].mxu0
    %v1102 = vadd.f32 %v854, %v1101
    %v1103 = vpop.f32.mrb[0].mxu0
    %1104 = vmatprep.mubr.bf16.mxu0 0
    %1105 = vmatmul.mubr.bf16.gmra.mrb[0].mxu0 %v839
    %v1106 = vpop.f32.mrb[0].mxu0
    %v1107 = vadd.f32 %v854, %v1106
    %v1108 = vpop.f32.mrb[0].mxu0
    %v1109 = vpop.f32.mrb[0].mxu0
    %v1110 = vadd.f32 %v854, %v1109
    %v1111 = vpop.f32.mrb[0].mxu0
    %1112 = vmatprep.mubr.bf16.mxu0 0
    %1113 = vmatmul.mubr.bf16.gmra.mrb[0].mxu0 %v840
    %v1114 = vpop.f32.mrb[0].mxu0
    %v1115 = vadd.f32 %v854, %v1114
    %v1116 = vpop.f32.mrb[0].mxu0
    %v1117 = vpop.f32.mrb[0].mxu0
    %v1118 = vadd.f32 %v854, %v1117
    %v1119 = vpop.f32.mrb[0].mxu0
    %1120 = vmatprep.mubr.bf16.mxu0 0
    %1121 = vmatmul.mubr.bf16.gmra.mrb[0].mxu0 %v841
    %v1122 = vpop.f32.mrb[0].mxu0
    %v1123 = vadd.f32 %v854, %v1122
    %v1124 = vpop.f32.mrb[0].mxu0
    %v1125 = vpop.f32.mrb[0].mxu0
    %v1126 = vadd.f32 %v854, %v1125
    %v1127 = vpop.f32.mrb[0].mxu0
    %1128 = vmatprep.mubr.bf16.mxu0 0
    %1129 = vmatmul.mubr.bf16.gmra.mrb[0].mxu0 %v842
    %v1130 = vpop.f32.mrb[0].mxu0
    %v1131 = vadd.f32 %v854, %v1130
    %v1132 = vpop.f32.mrb[0].mxu0
    %v1133 = vpop.f32.mrb[0].mxu0
    %v1134 = vadd.f32 %v854, %v1133
    %v1135 = vpop.f32.mrb[0].mxu0
    %1136 = vmatprep.mubr.bf16.mxu0 0
    %1137 = vmatmul.mubr.bf16.gmra.mrb[0].mxu0 %v843
    %v1138 = vpop.f32.mrb[0].mxu0
    %v1139 = vadd.f32 %v854, %v1138
    %v1140 = vpop.f32.mrb[0].mxu0
    %v1141 = vpop.f32.mrb[0].mxu0
    %v1142 = vadd.f32 %v854, %v1141
    %v1143 = vpop.f32.mrb[0].mxu0
    %1144 = vmatprep.mubr.bf16.mxu0 0
    %1145 = vmatmul.mubr.bf16.gmra.mrb[0].mxu0 %v844
    %v1146 = vpop.f32.mrb[0].mxu0
    %v1147 = vadd.f32 %v854, %v1146
    %v1148 = vpop.f32.mrb[0].mxu0
    %v1149 = vpop.f32.mrb[0].mxu0
    %v1150 = vadd.f32 %v854, %v1149
    %v1151 = vpop.f32.mrb[0].mxu0
    %1152 = vmatprep.mubr.bf16.mxu0 0
    %1153 = vmatmul.mubr.bf16.gmra.mrb[0].mxu0 %v845
    %v1154 = vpop.f32.mrb[0].mxu0
    %v1155 = vadd.f32 %v854, %v1154
    %v1156 = vpop.f32.mrb[0].mxu0
    %v1157 = vpop.f32.mrb[0].mxu0
    %v1158 = vadd.f32 %v854, %v1157
    %v1159 = vpop.f32.mrb[0].mxu0
    %1160 = vmatprep.mubr.bf16.mxu0 0
    %1161 = vmatmul.mubr.bf16.gmra.mrb[0].mxu0 %v846
    %v1162 = vpop.f32.mrb[0].mxu0
    %v1163 = vadd.f32 %v854, %v1162
    %v1164 = vpop.f32.mrb[0].mxu0
    %v1165 = vpop.f32.mrb[0].mxu0
    %v1166 = vadd.f32 %v854, %v1165
    %v1167 = vpop.f32.mrb[0].mxu0
    %1168 = vmatprep.mubr.bf16.mxu0 0
    %1169 = vmatmul.mubr.bf16.gmra.mrb[0].mxu0 %v847
    %v1170 = vpop.f32.mrb[0].mxu0
    %v1171 = vadd.f32 %v854, %v1170
    %v1172 = vpop.f32.mrb[0].mxu0
    %v1173 = vpop.f32.mrb[0].mxu0
    %v1174 = vadd.f32 %v854, %v1173
    %v1175 = vpop.f32.mrb[0].mxu0
    %1176 = vmatprep.mubr.bf16.mxu0 0
    %1177 = vmatmul.mubr.bf16.gmra.mrb[0].mxu0 %v848
    %v1178 = vpop.f32.mrb[0].mxu0
    %v1179 = vadd.f32 %v854, %v1178
    %v1180 = vpop.f32.mrb[0].mxu0
    %v1181 = vpop.f32.mrb[0].mxu0
    %v1182 = vadd.f32 %v854, %v1181
    %v1183 = vpop.f32.mrb[0].mxu0
    %1184 = vmatprep.mubr.bf16.mxu0 0
    %1185 = vmatmul.mubr.bf16.gmra.mrb[0].mxu0 %v849
    %v1186 = vpop.f32.mrb[0].mxu0
    %v1187 = vadd.f32 %v854, %v1186
    %v1188 = vpop.f32.mrb[0].mxu0
    %v1189 = vpop.f32.mrb[0].mxu0
    %v1190 = vadd.f32 %v854, %v1189
    %v1191 = vpop.f32.mrb[0].mxu0
    %1192 = vdwg.mxu0
    %v1193 = vtanh.pop %v939
    %v1194 = vtanh.pop %v942
    %v1195 = vtanh.pop %v947
    %v1196 = vtanh.pop %v950
    %v1197 = vtanh.pop %v955
    %v1198 = vtanh.pop %v958
    %v1199 = vtanh.pop %v963
    %v1200 = vtanh.pop %v966
    %v1201 = vtanh.pop %v971
    %v1202 = vtanh.pop %v974
    %v1203 = vtanh.pop %v979
    %v1204 = vtanh.pop %v982
    %v1205 = vtanh.pop %v987
    %v1206 = vtanh.pop %v990
    %v1207 = vtanh.pop %v995
    %v1208 = vtanh.pop %v998
    %v1209 = vtanh.pop %v1003
    %v1210 = vtanh.pop %v1006
    %v1211 = vtanh.pop %v1011
    %v1212 = vtanh.pop %v1014
    %v1213 = vtanh.pop %v1019
    %v1214 = vtanh.pop %v1022
    %v1215 = vtanh.pop %v1027
    %v1216 = vtanh.pop %v1030
    %v1217 = vtanh.pop %v1035
    %v1218 = vtanh.pop %v1038
    %v1219 = vtanh.pop %v1043
    %v1220 = vtanh.pop %v1046
    %v1221 = vtanh.pop %v1051
    %v1222 = vtanh.pop %v1054
    %v1223 = vtanh.pop %v1059
    %v1224 = vtanh.pop %v1062
    %v1225 = vtanh.pop %v1067
    %v1226 = vtanh.pop %v1070
    %v1227 = vtanh.pop %v1075
    %v1228 = vtanh.pop %v1078
    %v1229 = vtanh.pop %v1083
    %v1230 = vtanh.pop %v1086
    %v1231 = vtanh.pop %v1091
    %v1232 = vtanh.pop %v1094
    %v1233 = vtanh.pop %v1099
    %v1234 = vtanh.pop %v1102
    %v1235 = vtanh.pop %v1107
    %v1236 = vtanh.pop %v1110
    %v1237 = vtanh.pop %v1115
    %v1238 = vtanh.pop %v1118
    %v1239 = vtanh.pop %v1123
    %v1240 = vtanh.pop %v1126
    %v1241 = vtanh.pop %v1131
    %v1242 = vtanh.pop %v1134
    %v1243 = vtanh.pop %v1139
    %v1244 = vtanh.pop %v1142
    %v1245 = vtanh.pop %v1147
    %v1246 = vtanh.pop %v1150
    %v1247 = vtanh.pop %v1155
    %v1248 = vtanh.pop %v1158
    %v1249 = vtanh.pop %v1163
    %v1250 = vtanh.pop %v1166
    %v1251 = vtanh.pop %v1171
    %v1252 = vtanh.pop %v1174
    %v1253 = vtanh.pop %v1179
    %v1254 = vtanh.pop %v1182
    %v1255 = vtanh.pop %v1187
    %v1256 = vtanh.pop %v1190
    %v1257 = vadd.f32 %v1193, %v735
    %v1258 = vadd.f32 %v1194, %v736
    %v1259 = vadd.f32 %v1195, %v737
    %v1260 = vadd.f32 %v1196, %v738
    %v1261 = vadd.f32 %v1197, %v739
    %v1262 = vadd.f32 %v1198, %v740
    %v1263 = vadd.f32 %v1199, %v741
    %v1264 = vadd.f32 %v1200, %v742
    %v1265 = vadd.f32 %v1201, %v743
    %v1266 = vadd.f32 %v1202, %v744
    %v1267 = vadd.f32 %v1203, %v745
    %v1268 = vadd.f32 %v1204, %v746
    %v1269 = vadd.f32 %v1205, %v747
    %v1270 = vadd.f32 %v1206, %v748
    %v1271 = vadd.f32 %v1207, %v749
    %v1272 = vadd.f32 %v1208, %v750
    %v1273 = vadd.f32 %v1209, %v751
    %v1274 = vadd.f32 %v1210, %v752
    %v1275 = vadd.f32 %v1211, %v753
    %v1276 = vadd.f32 %v1212, %v754
    %v1277 = vadd.f32 %v1213, %v755
    %v1278 = vadd.f32 %v1214, %v756
    %v1279 = vadd.f32 %v1215, %v757
    %v1280 = vadd.f32 %v1216, %v758
    %v1281 = vadd.f32 %v1217, %v759
    %v1282 = vadd.f32 %v1218, %v760
    %v1283 = vadd.f32 %v1219, %v761
    %v1284 = vadd.f32 %v1220, %v762
    %v1285 = vadd.f32 %v1221, %v763
    %v1286 = vadd.f32 %v1222, %v764
    %v1287 = vadd.f32 %v1223, %v765
    %v1288 = vadd.f32 %v1224, %v766
    %v1289 = vadd.f32 %v1225, %v767
    %v1290 = vadd.f32 %v1226, %v768
    %v1291 = vadd.f32 %v1227, %v769
    %v1292 = vadd.f32 %v1228, %v770
    %v1293 = vadd.f32 %v1229, %v771
    %v1294 = vadd.f32 %v1230, %v772
    %v1295 = vadd.f32 %v1231, %v773
    %v1296 = vadd.f32 %v1232, %v774
    %v1297 = vadd.f32 %v1233, %v775
    %v1298 = vadd.f32 %v1234, %v776
    %v1299 = vadd.f32 %v1235, %v777
    %v1300 = vadd.f32 %v1236, %v778
    %v1301 = vadd.f32 %v1237, %v779
    %v1302 = vadd.f32 %v1238, %v780
    %v1303 = vadd.f32 %v1239, %v781
    %v1304 = vadd.f32 %v1240, %v782
    %v1305 = vadd.f32 %v1241, %v783
    %v1306 = vadd.f32 %v1242, %v784
    %v1307 = vadd.f32 %v1243, %v785
    %v1308 = vadd.f32 %v1244, %v786
    %v1309 = vadd.f32 %v1245, %v787
    %v1310 = vadd.f32 %v1246, %v788
    %v1311 = vadd.f32 %v1247, %v789
    %v1312 = vadd.f32 %v1248, %v790
    %v1313 = vadd.f32 %v1249, %v791
    %v1314 = vadd.f32 %v1250, %v792
    %v1315 = vadd.f32 %v1251, %v793
    %v1316 = vadd.f32 %v1252, %v794
    %v1317 = vadd.f32 %v1253, %v795
    %v1318 = vadd.f32 %v1254, %v796
    %v1319 = vadd.f32 %v1255, %v797
    %v1320 = vadd.f32 %v1256, %v798
    %s1321 = scalar_lea.vmem %s1, 128
    %v1322 = vld [vmem:[%s1321] sm:$0xf]
    %v1323 = vld [vmem:[%s1321 + $0x4] sm:$0xf]
    %v1324 = vld [vmem:[%s1321 + $0x8] sm:$0xf]
    %v1325 = vld [vmem:[%s1321 + $0xc] sm:$0xf]
    %v1326 = vld [vmem:[%s1321 + $0x10] sm:$0xf]
    %v1327 = vld [vmem:[%s1321 + $0x14] sm:$0xf]
    %v1328 = vld [vmem:[%s1321 + $0x18] sm:$0xf]
    %v1329 = vld [vmem:[%s1321 + $0x1c] sm:$0xf]
    %v1330 = vld [vmem:[%s1321 + $0x20] sm:$0xf]
    %v1331 = vld [vmem:[%s1321 + $0x24] sm:$0xf]
    %v1332 = vld [vmem:[%s1321 + $0x28] sm:$0xf]
    %v1333 = vld [vmem:[%s1321 + $0x2c] sm:$0xf]
    %v1334 = vld [vmem:[%s1321 + $0x30] sm:$0xf]
    %v1335 = vld [vmem:[%s1321 + $0x34] sm:$0xf]
    %v1336 = vld [vmem:[%s1321 + $0x38] sm:$0xf]
    %v1337 = vld [vmem:[%s1321 + $0x3c] sm:$0xf]
    %s1338 = scalar_lea.vmem %s2, 2
    %v1339 = vld [vmem:[%s1338] sm:$0x1]
    %v1340 = vpack.c.bf16 %v1258, %v1257
    %v1341 = vpack.c.bf16 %v1260, %v1259
    %v1342 = vpack.c.bf16 %v1262, %v1261
    %v1343 = vpack.c.bf16 %v1264, %v1263
    %v1344 = vpack.c.bf16 %v1266, %v1265
    %v1345 = vpack.c.bf16 %v1268, %v1267
    %v1346 = vpack.c.bf16 %v1270, %v1269
    %v1347 = vpack.c.bf16 %v1272, %v1271
    %v1348 = vpack.c.bf16 %v1274, %v1273
    %v1349 = vpack.c.bf16 %v1276, %v1275
    %v1350 = vpack.c.bf16 %v1278, %v1277
    %v1351 = vpack.c.bf16 %v1280, %v1279
    %v1352 = vpack.c.bf16 %v1282, %v1281
    %v1353 = vpack.c.bf16 %v1284, %v1283
    %v1354 = vpack.c.bf16 %v1286, %v1285
    %v1355 = vpack.c.bf16 %v1288, %v1287
    %v1356 = vpack.c.bf16 %v1290, %v1289
    %v1357 = vpack.c.bf16 %v1292, %v1291
    %v1358 = vpack.c.bf16 %v1294, %v1293
    %v1359 = vpack.c.bf16 %v1296, %v1295
    %v1360 = vpack.c.bf16 %v1298, %v1297
    %v1361 = vpack.c.bf16 %v1300, %v1299
    %v1362 = vpack.c.bf16 %v1302, %v1301
    %v1363 = vpack.c.bf16 %v1304, %v1303
    %v1364 = vpack.c.bf16 %v1306, %v1305
    %v1365 = vpack.c.bf16 %v1308, %v1307
    %v1366 = vpack.c.bf16 %v1310, %v1309
    %v1367 = vpack.c.bf16 %v1312, %v1311
    %v1368 = vpack.c.bf16 %v1314, %v1313
    %v1369 = vpack.c.bf16 %v1316, %v1315
    %v1370 = vpack.c.bf16 %v1318, %v1317
    %v1371 = vpack.c.bf16 %v1320, %v1319
    %v1373 = vlaneseq
    %v1374 = vshrl.u32 %v1373, 7
    %v1375 = vsub.s32 0, %v1374
    %v1376 = vrot.slane %v1339, %v1375
    %v1394 = vunpack.c.l.b16 %v1322
    %v1395 = vunpack.c.l.b16 %v1323
    %v1396 = vunpack.c.l.b16 %v1324
    %v1397 = vunpack.c.l.b16 %v1325
    %v1398 = vunpack.c.l.b16 %v1326
    %v1399 = vunpack.c.l.b16 %v1327
    %v1400 = vunpack.c.l.b16 %v1328
    %v1401 = vunpack.c.l.b16 %v1329
    %v1402 = vunpack.c.l.b16 %v1330
    %v1403 = vunpack.c.l.b16 %v1331
    %v1404 = vunpack.c.l.b16 %v1332
    %v1405 = vunpack.c.l.b16 %v1333
    %v1406 = vunpack.c.l.b16 %v1334
    %v1407 = vunpack.c.l.b16 %v1335
    %v1408 = vunpack.c.l.b16 %v1336
    %v1409 = vunpack.c.l.b16 %v1337
    %v1410 = vpack.c.b16 %v1395, %v1394
    %v1411 = vpack.c.b16 %v1397, %v1396
    %v1412 = vpack.c.b16 %v1399, %v1398
    %v1413 = vpack.c.b16 %v1401, %v1400
    %v1414 = vpack.c.b16 %v1403, %v1402
    %v1415 = vpack.c.b16 %v1405, %v1404
    %v1416 = vpack.c.b16 %v1407, %v1406
    %v1417 = vpack.c.b16 %v1409, %v1408
    %1426 = vmatprep.subr.bf16.mxu0 0
    %1427 = vmatpush1.bf16.msra.mxu0 %v1410
    %1428 = vmatprep.subr.bf16.mxu0 0
    %1429 = vmatpush1.bf16.msra.mxu0 %v1411
    %1430 = vmatprep.subr.bf16.mxu0 0
    %1431 = vmatpush1.bf16.msra.mxu0 %v1412
    %1432 = vmatprep.subr.bf16.mxu0 0
    %1433 = vmatpush1.bf16.msra.mxu0 %v1413
    %1434 = vmatprep.subr.bf16.mxu0 0
    %1435 = vmatpush1.bf16.msra.mxu0 %v1414
    %1436 = vmatprep.subr.bf16.mxu0 0
    %1437 = vmatpush1.bf16.msra.mxu0 %v1415
    %1438 = vmatprep.subr.bf16.mxu0 0
    %1439 = vmatpush1.bf16.msra.mxu0 %v1416
    %1440 = vmatprep.subr.bf16.mxu0 0
    %1441 = vmatpush1.bf16.msra.mxu0 %v1417
    %1442 = vmatprep.subr.bf16.mxu0 0
    %1443 = vmatpush1.bf16.msra.mxu0 0
    %1444 = vmatprep.subr.bf16.mxu0 0
    %1445 = vmatpush1.bf16.msra.mxu0 0
    %1446 = vmatprep.subr.bf16.mxu0 0
    %1447 = vmatpush1.bf16.msra.mxu0 0
    %1448 = vmatprep.subr.bf16.mxu0 0
    %1449 = vmatpush1.bf16.msra.mxu0 0
    %1450 = vmatprep.subr.bf16.mxu0 0
    %1451 = vmatpush1.bf16.msra.mxu0 0
    %1452 = vmatprep.subr.bf16.mxu0 0
    %1453 = vmatpush1.bf16.msra.mxu0 0
    %1454 = vmatprep.subr.bf16.mxu0 0
    %1455 = vmatpush1.bf16.msra.mxu0 0
    %1456 = vmatprep.subr.bf16.mxu0 0
    %1457 = vmatpush1.bf16.msra.mxu0 0
    %1458 = vmatprep.mubr.bf16.mxu0 0
    %1459 = vmatmul.mubr.bf16.gmra.mrb[0].mxu0 %v1340
    %v1460 = vpop.f32.mrb[0].mxu0
    %v1461 = vadd.f32 %v1376, %v1460
    %v1462 = vpop.f32.mrb[0].mxu0
    %v1463 = vpop.f32.mrb[0].mxu0
    %v1464 = vadd.f32 %v1376, %v1463
    %v1465 = vpop.f32.mrb[0].mxu0
    %1466 = vmatprep.mubr.bf16.mxu0 0
    %1467 = vmatmul.mubr.bf16.gmra.mrb[0].mxu0 %v1341
    %v1468 = vpop.f32.mrb[0].mxu0
    %v1469 = vadd.f32 %v1376, %v1468
    %v1470 = vpop.f32.mrb[0].mxu0
    %v1471 = vpop.f32.mrb[0].mxu0
    %v1472 = vadd.f32 %v1376, %v1471
    %v1473 = vpop.f32.mrb[0].mxu0
    %1474 = vmatprep.mubr.bf16.mxu0 0
    %1475 = vmatmul.mubr.bf16.gmra.mrb[0].mxu0 %v1342
    %v1476 = vpop.f32.mrb[0].mxu0
    %v1477 = vadd.f32 %v1376, %v1476
    %v1478 = vpop.f32.mrb[0].mxu0
    %v1479 = vpop.f32.mrb[0].mxu0
    %v1480 = vadd.f32 %v1376, %v1479
    %v1481 = vpop.f32.mrb[0].mxu0
    %1482 = vmatprep.mubr.bf16.mxu0 0
    %1483 = vmatmul.mubr.bf16.gmra.mrb[0].mxu0 %v1343
    %v1484 = vpop.f32.mrb[0].mxu0
    %v1485 = vadd.f32 %v1376, %v1484
    %v1486 = vpop.f32.mrb[0].mxu0
    %v1487 = vpop.f32.mrb[0].mxu0
    %v1488 = vadd.f32 %v1376, %v1487
    %v1489 = vpop.f32.mrb[0].mxu0
    %1490 = vmatprep.mubr.bf16.mxu0 0
    %1491 = vmatmul.mubr.bf16.gmra.mrb[0].mxu0 %v1344
    %v1492 = vpop.f32.mrb[0].mxu0
    %v1493 = vadd.f32 %v1376, %v1492
    %v1494 = vpop.f32.mrb[0].mxu0
    %v1495 = vpop.f32.mrb[0].mxu0
    %v1496 = vadd.f32 %v1376, %v1495
    %v1497 = vpop.f32.mrb[0].mxu0
    %1498 = vmatprep.mubr.bf16.mxu0 0
    %1499 = vmatmul.mubr.bf16.gmra.mrb[0].mxu0 %v1345
    %v1500 = vpop.f32.mrb[0].mxu0
    %v1501 = vadd.f32 %v1376, %v1500
    %v1502 = vpop.f32.mrb[0].mxu0
    %v1503 = vpop.f32.mrb[0].mxu0
    %v1504 = vadd.f32 %v1376, %v1503
    %v1505 = vpop.f32.mrb[0].mxu0
    %1506 = vmatprep.mubr.bf16.mxu0 0
    %1507 = vmatmul.mubr.bf16.gmra.mrb[0].mxu0 %v1346
    %v1508 = vpop.f32.mrb[0].mxu0
    %v1509 = vadd.f32 %v1376, %v1508
    %v1510 = vpop.f32.mrb[0].mxu0
    %v1511 = vpop.f32.mrb[0].mxu0
    %v1512 = vadd.f32 %v1376, %v1511
    %v1513 = vpop.f32.mrb[0].mxu0
    %1514 = vmatprep.mubr.bf16.mxu0 0
    %1515 = vmatmul.mubr.bf16.gmra.mrb[0].mxu0 %v1347
    %v1516 = vpop.f32.mrb[0].mxu0
    %v1517 = vadd.f32 %v1376, %v1516
    %v1518 = vpop.f32.mrb[0].mxu0
    %v1519 = vpop.f32.mrb[0].mxu0
    %v1520 = vadd.f32 %v1376, %v1519
    %v1521 = vpop.f32.mrb[0].mxu0
    %1522 = vmatprep.mubr.bf16.mxu0 0
    %1523 = vmatmul.mubr.bf16.gmra.mrb[0].mxu0 %v1348
    %v1524 = vpop.f32.mrb[0].mxu0
    %v1525 = vadd.f32 %v1376, %v1524
    %v1526 = vpop.f32.mrb[0].mxu0
    %v1527 = vpop.f32.mrb[0].mxu0
    %v1528 = vadd.f32 %v1376, %v1527
    %v1529 = vpop.f32.mrb[0].mxu0
    %1530 = vmatprep.mubr.bf16.mxu0 0
    %1531 = vmatmul.mubr.bf16.gmra.mrb[0].mxu0 %v1349
    %v1532 = vpop.f32.mrb[0].mxu0
    %v1533 = vadd.f32 %v1376, %v1532
    %v1534 = vpop.f32.mrb[0].mxu0
    %v1535 = vpop.f32.mrb[0].mxu0
    %v1536 = vadd.f32 %v1376, %v1535
    %v1537 = vpop.f32.mrb[0].mxu0
    %1538 = vmatprep.mubr.bf16.mxu0 0
    %1539 = vmatmul.mubr.bf16.gmra.mrb[0].mxu0 %v1350
    %v1540 = vpop.f32.mrb[0].mxu0
    %v1541 = vadd.f32 %v1376, %v1540
    %v1542 = vpop.f32.mrb[0].mxu0
    %v1543 = vpop.f32.mrb[0].mxu0
    %v1544 = vadd.f32 %v1376, %v1543
    %v1545 = vpop.f32.mrb[0].mxu0
    %1546 = vmatprep.mubr.bf16.mxu0 0
    %1547 = vmatmul.mubr.bf16.gmra.mrb[0].mxu0 %v1351
    %v1548 = vpop.f32.mrb[0].mxu0
    %v1549 = vadd.f32 %v1376, %v1548
    %v1550 = vpop.f32.mrb[0].mxu0
    %v1551 = vpop.f32.mrb[0].mxu0
    %v1552 = vadd.f32 %v1376, %v1551
    %v1553 = vpop.f32.mrb[0].mxu0
    %1554 = vmatprep.mubr.bf16.mxu0 0
    %1555 = vmatmul.mubr.bf16.gmra.mrb[0].mxu0 %v1352
    %v1556 = vpop.f32.mrb[0].mxu0
    %v1557 = vadd.f32 %v1376, %v1556
    %v1558 = vpop.f32.mrb[0].mxu0
    %v1559 = vpop.f32.mrb[0].mxu0
    %v1560 = vadd.f32 %v1376, %v1559
    %v1561 = vpop.f32.mrb[0].mxu0
    %1562 = vmatprep.mubr.bf16.mxu0 0
    %1563 = vmatmul.mubr.bf16.gmra.mrb[0].mxu0 %v1353
    %v1564 = vpop.f32.mrb[0].mxu0
    %v1565 = vadd.f32 %v1376, %v1564
    %v1566 = vpop.f32.mrb[0].mxu0
    %v1567 = vpop.f32.mrb[0].mxu0
    %v1568 = vadd.f32 %v1376, %v1567
    %v1569 = vpop.f32.mrb[0].mxu0
    %1570 = vmatprep.mubr.bf16.mxu0 0
    %1571 = vmatmul.mubr.bf16.gmra.mrb[0].mxu0 %v1354
    %v1572 = vpop.f32.mrb[0].mxu0
    %v1573 = vadd.f32 %v1376, %v1572
    %v1574 = vpop.f32.mrb[0].mxu0
    %v1575 = vpop.f32.mrb[0].mxu0
    %v1576 = vadd.f32 %v1376, %v1575
    %v1577 = vpop.f32.mrb[0].mxu0
    %1578 = vmatprep.mubr.bf16.mxu0 0
    %1579 = vmatmul.mubr.bf16.gmra.mrb[0].mxu0 %v1355
    %v1580 = vpop.f32.mrb[0].mxu0
    %v1581 = vadd.f32 %v1376, %v1580
    %v1582 = vpop.f32.mrb[0].mxu0
    %v1583 = vpop.f32.mrb[0].mxu0
    %v1584 = vadd.f32 %v1376, %v1583
    %v1585 = vpop.f32.mrb[0].mxu0
    %1586 = vmatprep.mubr.bf16.mxu0 0
    %1587 = vmatmul.mubr.bf16.gmra.mrb[0].mxu0 %v1356
    %v1588 = vpop.f32.mrb[0].mxu0
    %v1589 = vadd.f32 %v1376, %v1588
    %v1590 = vpop.f32.mrb[0].mxu0
    %v1591 = vpop.f32.mrb[0].mxu0
    %v1592 = vadd.f32 %v1376, %v1591
    %v1593 = vpop.f32.mrb[0].mxu0
    %1594 = vmatprep.mubr.bf16.mxu0 0
    %1595 = vmatmul.mubr.bf16.gmra.mrb[0].mxu0 %v1357
    %v1596 = vpop.f32.mrb[0].mxu0
    %v1597 = vadd.f32 %v1376, %v1596
    %v1598 = vpop.f32.mrb[0].mxu0
    %v1599 = vpop.f32.mrb[0].mxu0
    %v1600 = vadd.f32 %v1376, %v1599
    %v1601 = vpop.f32.mrb[0].mxu0
    %1602 = vmatprep.mubr.bf16.mxu0 0
    %1603 = vmatmul.mubr.bf16.gmra.mrb[0].mxu0 %v1358
    %v1604 = vpop.f32.mrb[0].mxu0
    %v1605 = vadd.f32 %v1376, %v1604
    %v1606 = vpop.f32.mrb[0].mxu0
    %v1607 = vpop.f32.mrb[0].mxu0
    %v1608 = vadd.f32 %v1376, %v1607
    %v1609 = vpop.f32.mrb[0].mxu0
    %1610 = vmatprep.mubr.bf16.mxu0 0
    %1611 = vmatmul.mubr.bf16.gmra.mrb[0].mxu0 %v1359
    %v1612 = vpop.f32.mrb[0].mxu0
    %v1613 = vadd.f32 %v1376, %v1612
    %v1614 = vpop.f32.mrb[0].mxu0
    %v1615 = vpop.f32.mrb[0].mxu0
    %v1616 = vadd.f32 %v1376, %v1615
    %v1617 = vpop.f32.mrb[0].mxu0
    %1618 = vmatprep.mubr.bf16.mxu0 0
    %1619 = vmatmul.mubr.bf16.gmra.mrb[0].mxu0 %v1360
    %v1620 = vpop.f32.mrb[0].mxu0
    %v1621 = vadd.f32 %v1376, %v1620
    %v1622 = vpop.f32.mrb[0].mxu0
    %v1623 = vpop.f32.mrb[0].mxu0
    %v1624 = vadd.f32 %v1376, %v1623
    %v1625 = vpop.f32.mrb[0].mxu0
    %1626 = vmatprep.mubr.bf16.mxu0 0
    %1627 = vmatmul.mubr.bf16.gmra.mrb[0].mxu0 %v1361
    %v1628 = vpop.f32.mrb[0].mxu0
    %v1629 = vadd.f32 %v1376, %v1628
    %v1630 = vpop.f32.mrb[0].mxu0
    %v1631 = vpop.f32.mrb[0].mxu0
    %v1632 = vadd.f32 %v1376, %v1631
    %v1633 = vpop.f32.mrb[0].mxu0
    %1634 = vmatprep.mubr.bf16.mxu0 0
    %1635 = vmatmul.mubr.bf16.gmra.mrb[0].mxu0 %v1362
    %v1636 = vpop.f32.mrb[0].mxu0
    %v1637 = vadd.f32 %v1376, %v1636
    %v1638 = vpop.f32.mrb[0].mxu0
    %v1639 = vpop.f32.mrb[0].mxu0
    %v1640 = vadd.f32 %v1376, %v1639
    %v1641 = vpop.f32.mrb[0].mxu0
    %1642 = vmatprep.mubr.bf16.mxu0 0
    %1643 = vmatmul.mubr.bf16.gmra.mrb[0].mxu0 %v1363
    %v1644 = vpop.f32.mrb[0].mxu0
    %v1645 = vadd.f32 %v1376, %v1644
    %v1646 = vpop.f32.mrb[0].mxu0
    %v1647 = vpop.f32.mrb[0].mxu0
    %v1648 = vadd.f32 %v1376, %v1647
    %v1649 = vpop.f32.mrb[0].mxu0
    %1650 = vmatprep.mubr.bf16.mxu0 0
    %1651 = vmatmul.mubr.bf16.gmra.mrb[0].mxu0 %v1364
    %v1652 = vpop.f32.mrb[0].mxu0
    %v1653 = vadd.f32 %v1376, %v1652
    %v1654 = vpop.f32.mrb[0].mxu0
    %v1655 = vpop.f32.mrb[0].mxu0
    %v1656 = vadd.f32 %v1376, %v1655
    %v1657 = vpop.f32.mrb[0].mxu0
    %1658 = vmatprep.mubr.bf16.mxu0 0
    %1659 = vmatmul.mubr.bf16.gmra.mrb[0].mxu0 %v1365
    %v1660 = vpop.f32.mrb[0].mxu0
    %v1661 = vadd.f32 %v1376, %v1660
    %v1662 = vpop.f32.mrb[0].mxu0
    %v1663 = vpop.f32.mrb[0].mxu0
    %v1664 = vadd.f32 %v1376, %v1663
    %v1665 = vpop.f32.mrb[0].mxu0
    %1666 = vmatprep.mubr.bf16.mxu0 0
    %1667 = vmatmul.mubr.bf16.gmra.mrb[0].mxu0 %v1366
    %v1668 = vpop.f32.mrb[0].mxu0
    %v1669 = vadd.f32 %v1376, %v1668
    %v1670 = vpop.f32.mrb[0].mxu0
    %v1671 = vpop.f32.mrb[0].mxu0
    %v1672 = vadd.f32 %v1376, %v1671
    %v1673 = vpop.f32.mrb[0].mxu0
    %1674 = vmatprep.mubr.bf16.mxu0 0
    %1675 = vmatmul.mubr.bf16.gmra.mrb[0].mxu0 %v1367
    %v1676 = vpop.f32.mrb[0].mxu0
    %v1677 = vadd.f32 %v1376, %v1676
    %v1678 = vpop.f32.mrb[0].mxu0
    %v1679 = vpop.f32.mrb[0].mxu0
    %v1680 = vadd.f32 %v1376, %v1679
    %v1681 = vpop.f32.mrb[0].mxu0
    %1682 = vmatprep.mubr.bf16.mxu0 0
    %1683 = vmatmul.mubr.bf16.gmra.mrb[0].mxu0 %v1368
    %v1684 = vpop.f32.mrb[0].mxu0
    %v1685 = vadd.f32 %v1376, %v1684
    %v1686 = vpop.f32.mrb[0].mxu0
    %v1687 = vpop.f32.mrb[0].mxu0
    %v1688 = vadd.f32 %v1376, %v1687
    %v1689 = vpop.f32.mrb[0].mxu0
    %1690 = vmatprep.mubr.bf16.mxu0 0
    %1691 = vmatmul.mubr.bf16.gmra.mrb[0].mxu0 %v1369
    %v1692 = vpop.f32.mrb[0].mxu0
    %v1693 = vadd.f32 %v1376, %v1692
    %v1694 = vpop.f32.mrb[0].mxu0
    %v1695 = vpop.f32.mrb[0].mxu0
    %v1696 = vadd.f32 %v1376, %v1695
    %v1697 = vpop.f32.mrb[0].mxu0
    %1698 = vmatprep.mubr.bf16.mxu0 0
    %1699 = vmatmul.mubr.bf16.gmra.mrb[0].mxu0 %v1370
    %v1700 = vpop.f32.mrb[0].mxu0
    %v1701 = vadd.f32 %v1376, %v1700
    %v1702 = vpop.f32.mrb[0].mxu0
    %v1703 = vpop.f32.mrb[0].mxu0
    %v1704 = vadd.f32 %v1376, %v1703
    %v1705 = vpop.f32.mrb[0].mxu0
    %1706 = vmatprep.mubr.bf16.mxu0 0
    %1707 = vmatmul.mubr.bf16.gmra.mrb[0].mxu0 %v1371
    %v1708 = vpop.f32.mrb[0].mxu0
    %v1709 = vadd.f32 %v1376, %v1708
    %v1710 = vpop.f32.mrb[0].mxu0
    %v1711 = vpop.f32.mrb[0].mxu0
    %v1712 = vadd.f32 %v1376, %v1711
    %v1713 = vpop.f32.mrb[0].mxu0
    %1714 = vdwg.mxu0
    %v1715 = vtanh.pop %v1461
    %v1716 = vtanh.pop %v1464
    %v1717 = vtanh.pop %v1469
    %v1718 = vtanh.pop %v1472
    %v1719 = vtanh.pop %v1477
    %v1720 = vtanh.pop %v1480
    %v1721 = vtanh.pop %v1485
    %v1722 = vtanh.pop %v1488
    %v1723 = vtanh.pop %v1493
    %v1724 = vtanh.pop %v1496
    %v1725 = vtanh.pop %v1501
    %v1726 = vtanh.pop %v1504
    %v1727 = vtanh.pop %v1509
    %v1728 = vtanh.pop %v1512
    %v1729 = vtanh.pop %v1517
    %v1730 = vtanh.pop %v1520
    %v1731 = vtanh.pop %v1525
    %v1732 = vtanh.pop %v1528
    %v1733 = vtanh.pop %v1533
    %v1734 = vtanh.pop %v1536
    %v1735 = vtanh.pop %v1541
    %v1736 = vtanh.pop %v1544
    %v1737 = vtanh.pop %v1549
    %v1738 = vtanh.pop %v1552
    %v1739 = vtanh.pop %v1557
    %v1740 = vtanh.pop %v1560
    %v1741 = vtanh.pop %v1565
    %v1742 = vtanh.pop %v1568
    %v1743 = vtanh.pop %v1573
    %v1744 = vtanh.pop %v1576
    %v1745 = vtanh.pop %v1581
    %v1746 = vtanh.pop %v1584
    %v1747 = vtanh.pop %v1589
    %v1748 = vtanh.pop %v1592
    %v1749 = vtanh.pop %v1597
    %v1750 = vtanh.pop %v1600
    %v1751 = vtanh.pop %v1605
    %v1752 = vtanh.pop %v1608
    %v1753 = vtanh.pop %v1613
    %v1754 = vtanh.pop %v1616
    %v1755 = vtanh.pop %v1621
    %v1756 = vtanh.pop %v1624
    %v1757 = vtanh.pop %v1629
    %v1758 = vtanh.pop %v1632
    %v1759 = vtanh.pop %v1637
    %v1760 = vtanh.pop %v1640
    %v1761 = vtanh.pop %v1645
    %v1762 = vtanh.pop %v1648
    %v1763 = vtanh.pop %v1653
    %v1764 = vtanh.pop %v1656
    %v1765 = vtanh.pop %v1661
    %v1766 = vtanh.pop %v1664
    %v1767 = vtanh.pop %v1669
    %v1768 = vtanh.pop %v1672
    %v1769 = vtanh.pop %v1677
    %v1770 = vtanh.pop %v1680
    %v1771 = vtanh.pop %v1685
    %v1772 = vtanh.pop %v1688
    %v1773 = vtanh.pop %v1693
    %v1774 = vtanh.pop %v1696
    %v1775 = vtanh.pop %v1701
    %v1776 = vtanh.pop %v1704
    %v1777 = vtanh.pop %v1709
    %v1778 = vtanh.pop %v1712
    %v1779 = vadd.f32 %v1715, %v1257
    %v1780 = vadd.f32 %v1716, %v1258
    %v1781 = vadd.f32 %v1717, %v1259
    %v1782 = vadd.f32 %v1718, %v1260
    %v1783 = vadd.f32 %v1719, %v1261
    %v1784 = vadd.f32 %v1720, %v1262
    %v1785 = vadd.f32 %v1721, %v1263
    %v1786 = vadd.f32 %v1722, %v1264
    %v1787 = vadd.f32 %v1723, %v1265
    %v1788 = vadd.f32 %v1724, %v1266
    %v1789 = vadd.f32 %v1725, %v1267
    %v1790 = vadd.f32 %v1726, %v1268
    %v1791 = vadd.f32 %v1727, %v1269
    %v1792 = vadd.f32 %v1728, %v1270
    %v1793 = vadd.f32 %v1729, %v1271
    %v1794 = vadd.f32 %v1730, %v1272
    %v1795 = vadd.f32 %v1731, %v1273
    %v1796 = vadd.f32 %v1732, %v1274
    %v1797 = vadd.f32 %v1733, %v1275
    %v1798 = vadd.f32 %v1734, %v1276
    %v1799 = vadd.f32 %v1735, %v1277
    %v1800 = vadd.f32 %v1736, %v1278
    %v1801 = vadd.f32 %v1737, %v1279
    %v1802 = vadd.f32 %v1738, %v1280
    %v1803 = vadd.f32 %v1739, %v1281
    %v1804 = vadd.f32 %v1740, %v1282
    %v1805 = vadd.f32 %v1741, %v1283
    %v1806 = vadd.f32 %v1742, %v1284
    %v1807 = vadd.f32 %v1743, %v1285
    %v1808 = vadd.f32 %v1744, %v1286
    %v1809 = vadd.f32 %v1745, %v1287
    %v1810 = vadd.f32 %v1746, %v1288
    %v1811 = vadd.f32 %v1747, %v1289
    %v1812 = vadd.f32 %v1748, %v1290
    %v1813 = vadd.f32 %v1749, %v1291
    %v1814 = vadd.f32 %v1750, %v1292
    %v1815 = vadd.f32 %v1751, %v1293
    %v1816 = vadd.f32 %v1752, %v1294
    %v1817 = vadd.f32 %v1753, %v1295
    %v1818 = vadd.f32 %v1754, %v1296
    %v1819 = vadd.f32 %v1755, %v1297
    %v1820 = vadd.f32 %v1756, %v1298
    %v1821 = vadd.f32 %v1757, %v1299
    %v1822 = vadd.f32 %v1758, %v1300
    %v1823 = vadd.f32 %v1759, %v1301
    %v1824 = vadd.f32 %v1760, %v1302
    %v1825 = vadd.f32 %v1761, %v1303
    %v1826 = vadd.f32 %v1762, %v1304
    %v1827 = vadd.f32 %v1763, %v1305
    %v1828 = vadd.f32 %v1764, %v1306
    %v1829 = vadd.f32 %v1765, %v1307
    %v1830 = vadd.f32 %v1766, %v1308
    %v1831 = vadd.f32 %v1767, %v1309
    %v1832 = vadd.f32 %v1768, %v1310
    %v1833 = vadd.f32 %v1769, %v1311
    %v1834 = vadd.f32 %v1770, %v1312
    %v1835 = vadd.f32 %v1771, %v1313
    %v1836 = vadd.f32 %v1772, %v1314
    %v1837 = vadd.f32 %v1773, %v1315
    %v1838 = vadd.f32 %v1774, %v1316
    %v1839 = vadd.f32 %v1775, %v1317
    %v1840 = vadd.f32 %v1776, %v1318
    %v1841 = vadd.f32 %v1777, %v1319
    %v1842 = vadd.f32 %v1778, %v1320
    %v1843 = vpack.c.bf16 %v1780, %v1779
    %v1844 = vpack.c.bf16 %v1782, %v1781
    %v1845 = vpack.c.bf16 %v1784, %v1783
    %v1846 = vpack.c.bf16 %v1786, %v1785
    %v1847 = vpack.c.bf16 %v1788, %v1787
    %v1848 = vpack.c.bf16 %v1790, %v1789
    %v1849 = vpack.c.bf16 %v1792, %v1791
    %v1850 = vpack.c.bf16 %v1794, %v1793
    %v1851 = vpack.c.bf16 %v1796, %v1795
    %v1852 = vpack.c.bf16 %v1798, %v1797
    %v1853 = vpack.c.bf16 %v1800, %v1799
    %v1854 = vpack.c.bf16 %v1802, %v1801
    %v1855 = vpack.c.bf16 %v1804, %v1803
    %v1856 = vpack.c.bf16 %v1806, %v1805
    %v1857 = vpack.c.bf16 %v1808, %v1807
    %v1858 = vpack.c.bf16 %v1810, %v1809
    %v1859 = vpack.c.bf16 %v1812, %v1811
    %v1860 = vpack.c.bf16 %v1814, %v1813
    %v1861 = vpack.c.bf16 %v1816, %v1815
    %v1862 = vpack.c.bf16 %v1818, %v1817
    %v1863 = vpack.c.bf16 %v1820, %v1819
    %v1864 = vpack.c.bf16 %v1822, %v1821
    %v1865 = vpack.c.bf16 %v1824, %v1823
    %v1866 = vpack.c.bf16 %v1826, %v1825
    %v1867 = vpack.c.bf16 %v1828, %v1827
    %v1868 = vpack.c.bf16 %v1830, %v1829
    %v1869 = vpack.c.bf16 %v1832, %v1831
    %v1870 = vpack.c.bf16 %v1834, %v1833
    %v1871 = vpack.c.bf16 %v1836, %v1835
    %v1872 = vpack.c.bf16 %v1838, %v1837
    %v1873 = vpack.c.bf16 %v1840, %v1839
    %v1874 = vpack.c.bf16 %v1842, %v1841
    %v1875 = vld [vmem:[%s3] sm:$0xf]
    %v1876 = vld [vmem:[%s3 + $0x4] sm:$0xf]
    %v1877 = vld [vmem:[%s3 + $0x8] sm:$0xf]
    %v1878 = vld [vmem:[%s3 + $0xc] sm:$0xf]
    %v1879 = vld [vmem:[%s3 + $0x10] sm:$0xf]
    %v1880 = vld [vmem:[%s3 + $0x14] sm:$0xf]
    %v1881 = vld [vmem:[%s3 + $0x18] sm:$0xf]
    %v1882 = vld [vmem:[%s3 + $0x1c] sm:$0xf]
    %v1883 = vld [vmem:[%s3 + $0x20] sm:$0xf]
    %v1884 = vld [vmem:[%s3 + $0x24] sm:$0xf]
    %v1885 = vld [vmem:[%s3 + $0x28] sm:$0xf]
    %v1886 = vld [vmem:[%s3 + $0x2c] sm:$0xf]
    %v1887 = vld [vmem:[%s3 + $0x30] sm:$0xf]
    %v1888 = vld [vmem:[%s3 + $0x34] sm:$0xf]
    %v1889 = vld [vmem:[%s3 + $0x38] sm:$0xf]
    %v1890 = vld [vmem:[%s3 + $0x3c] sm:$0xf]
    %v1891 = vld [vmem:[%s4] sm:$0x1]
    %v1893 = vlaneseq
    %v1894 = vshrl.u32 %v1893, 7
    %v1895 = vsub.s32 0, %v1894
    %v1896 = vrot.slane %v1891, %v1895
    %v1914 = vunpack.c.l.b16 %v1875
    %v1915 = vunpack.c.l.b16 %v1876
    %v1916 = vunpack.c.l.b16 %v1877
    %v1917 = vunpack.c.l.b16 %v1878
    %v1918 = vunpack.c.l.b16 %v1879
    %v1919 = vunpack.c.l.b16 %v1880
    %v1920 = vunpack.c.l.b16 %v1881
    %v1921 = vunpack.c.l.b16 %v1882
    %v1922 = vunpack.c.l.b16 %v1883
    %v1923 = vunpack.c.l.b16 %v1884
    %v1924 = vunpack.c.l.b16 %v1885
    %v1925 = vunpack.c.l.b16 %v1886
    %v1926 = vunpack.c.l.b16 %v1887
    %v1927 = vunpack.c.l.b16 %v1888
    %v1928 = vunpack.c.l.b16 %v1889
    %v1929 = vunpack.c.l.b16 %v1890
    %v1930 = vpack.c.b16 %v1915, %v1914
    %v1931 = vpack.c.b16 %v1917, %v1916
    %v1932 = vpack.c.b16 %v1919, %v1918
    %v1933 = vpack.c.b16 %v1921, %v1920
    %v1934 = vpack.c.b16 %v1923, %v1922
    %v1935 = vpack.c.b16 %v1925, %v1924
    %v1936 = vpack.c.b16 %v1927, %v1926
    %v1937 = vpack.c.b16 %v1929, %v1928
    %1946 = vmatprep.subr.bf16.mxu0 0
    %1947 = vmatpush1.bf16.msra.mxu0 %v1930
    %1948 = vmatprep.subr.bf16.mxu0 0
    %1949 = vmatpush1.bf16.msra.mxu0 %v1931
    %1950 = vmatprep.subr.bf16.mxu0 0
    %1951 = vmatpush1.bf16.msra.mxu0 %v1932
    %1952 = vmatprep.subr.bf16.mxu0 0
    %1953 = vmatpush1.bf16.msra.mxu0 %v1933
    %1954 = vmatprep.subr.bf16.mxu0 0
    %1955 = vmatpush1.bf16.msra.mxu0 %v1934
    %1956 = vmatprep.subr.bf16.mxu0 0
    %1957 = vmatpush1.bf16.msra.mxu0 %v1935
    %1958 = vmatprep.subr.bf16.mxu0 0
    %1959 = vmatpush1.bf16.msra.mxu0 %v1936
    %1960 = vmatprep.subr.bf16.mxu0 0
    %1961 = vmatpush1.bf16.msra.mxu0 %v1937
    %1962 = vmatprep.subr.bf16.mxu0 0
    %1963 = vmatpush1.bf16.msra.mxu0 0
    %1964 = vmatprep.subr.bf16.mxu0 0
    %1965 = vmatpush1.bf16.msra.mxu0 0
    %1966 = vmatprep.subr.bf16.mxu0 0
    %1967 = vmatpush1.bf16.msra.mxu0 0
    %1968 = vmatprep.subr.bf16.mxu0 0
    %1969 = vmatpush1.bf16.msra.mxu0 0
    %1970 = vmatprep.subr.bf16.mxu0 0
    %1971 = vmatpush1.bf16.msra.mxu0 0
    %1972 = vmatprep.subr.bf16.mxu0 0
    %1973 = vmatpush1.bf16.msra.mxu0 0
    %1974 = vmatprep.subr.bf16.mxu0 0
    %1975 = vmatpush1.bf16.msra.mxu0 0
    %1976 = vmatprep.subr.bf16.mxu0 0
    %1977 = vmatpush1.bf16.msra.mxu0 0
    %1978 = vmatprep.mubr.bf16.mxu0 0
    %1979 = vmatmul.mubr.bf16.gmra.mrb[0].mxu0 %v1843
    %v1980 = vpop.f32.mrb[0].mxu0
    %v1981 = vadd.f32 %v1896, %v1980
    %v1982 = vpop.f32.mrb[0].mxu0
    %v1983 = vpop.f32.mrb[0].mxu0
    %v1984 = vadd.f32 %v1896, %v1983
    %v1985 = vpop.f32.mrb[0].mxu0
    %1986 = vmatprep.mubr.bf16.mxu0 0
    %1987 = vmatmul.mubr.bf16.gmra.mrb[0].mxu0 %v1844
    %v1988 = vpop.f32.mrb[0].mxu0
    %v1989 = vadd.f32 %v1896, %v1988
    %v1990 = vpop.f32.mrb[0].mxu0
    %v1991 = vpop.f32.mrb[0].mxu0
    %v1992 = vadd.f32 %v1896, %v1991
    %v1993 = vpop.f32.mrb[0].mxu0
    %1994 = vmatprep.mubr.bf16.mxu0 0
    %1995 = vmatmul.mubr.bf16.gmra.mrb[0].mxu0 %v1845
    %v1996 = vpop.f32.mrb[0].mxu0
    %v1997 = vadd.f32 %v1896, %v1996
    %v1998 = vpop.f32.mrb[0].mxu0
    %v1999 = vpop.f32.mrb[0].mxu0
    %v2000 = vadd.f32 %v1896, %v1999
    %v2001 = vpop.f32.mrb[0].mxu0
    %2002 = vmatprep.mubr.bf16.mxu0 0
    %2003 = vmatmul.mubr.bf16.gmra.mrb[0].mxu0 %v1846
    %v2004 = vpop.f32.mrb[0].mxu0
    %v2005 = vadd.f32 %v1896, %v2004
    %v2006 = vpop.f32.mrb[0].mxu0
    %v2007 = vpop.f32.mrb[0].mxu0
    %v2008 = vadd.f32 %v1896, %v2007
    %v2009 = vpop.f32.mrb[0].mxu0
    %2010 = vmatprep.mubr.bf16.mxu0 0
    %2011 = vmatmul.mubr.bf16.gmra.mrb[0].mxu0 %v1847
    %v2012 = vpop.f32.mrb[0].mxu0
    %v2013 = vadd.f32 %v1896, %v2012
    %v2014 = vpop.f32.mrb[0].mxu0
    %v2015 = vpop.f32.mrb[0].mxu0
    %v2016 = vadd.f32 %v1896, %v2015
    %v2017 = vpop.f32.mrb[0].mxu0
    %2018 = vmatprep.mubr.bf16.mxu0 0
    %2019 = vmatmul.mubr.bf16.gmra.mrb[0].mxu0 %v1848
    %v2020 = vpop.f32.mrb[0].mxu0
    %v2021 = vadd.f32 %v1896, %v2020
    %v2022 = vpop.f32.mrb[0].mxu0
    %v2023 = vpop.f32.mrb[0].mxu0
    %v2024 = vadd.f32 %v1896, %v2023
    %v2025 = vpop.f32.mrb[0].mxu0
    %2026 = vmatprep.mubr.bf16.mxu0 0
    %2027 = vmatmul.mubr.bf16.gmra.mrb[0].mxu0 %v1849
    %v2028 = vpop.f32.mrb[0].mxu0
    %v2029 = vadd.f32 %v1896, %v2028
    %v2030 = vpop.f32.mrb[0].mxu0
    %v2031 = vpop.f32.mrb[0].mxu0
    %v2032 = vadd.f32 %v1896, %v2031
    %v2033 = vpop.f32.mrb[0].mxu0
    %2034 = vmatprep.mubr.bf16.mxu0 0
    %2035 = vmatmul.mubr.bf16.gmra.mrb[0].mxu0 %v1850
    %v2036 = vpop.f32.mrb[0].mxu0
    %v2037 = vadd.f32 %v1896, %v2036
    %v2038 = vpop.f32.mrb[0].mxu0
    %v2039 = vpop.f32.mrb[0].mxu0
    %v2040 = vadd.f32 %v1896, %v2039
    %v2041 = vpop.f32.mrb[0].mxu0
    %2042 = vmatprep.mubr.bf16.mxu0 0
    %2043 = vmatmul.mubr.bf16.gmra.mrb[0].mxu0 %v1851
    %v2044 = vpop.f32.mrb[0].mxu0
    %v2045 = vadd.f32 %v1896, %v2044
    %v2046 = vpop.f32.mrb[0].mxu0
    %v2047 = vpop.f32.mrb[0].mxu0
    %v2048 = vadd.f32 %v1896, %v2047
    %v2049 = vpop.f32.mrb[0].mxu0
    %2050 = vmatprep.mubr.bf16.mxu0 0
    %2051 = vmatmul.mubr.bf16.gmra.mrb[0].mxu0 %v1852
    %v2052 = vpop.f32.mrb[0].mxu0
    %v2053 = vadd.f32 %v1896, %v2052
    %v2054 = vpop.f32.mrb[0].mxu0
    %v2055 = vpop.f32.mrb[0].mxu0
    %v2056 = vadd.f32 %v1896, %v2055
    %v2057 = vpop.f32.mrb[0].mxu0
    %2058 = vmatprep.mubr.bf16.mxu0 0
    %2059 = vmatmul.mubr.bf16.gmra.mrb[0].mxu0 %v1853
    %v2060 = vpop.f32.mrb[0].mxu0
    %v2061 = vadd.f32 %v1896, %v2060
    %v2062 = vpop.f32.mrb[0].mxu0
    %v2063 = vpop.f32.mrb[0].mxu0
    %v2064 = vadd.f32 %v1896, %v2063
    %v2065 = vpop.f32.mrb[0].mxu0
    %2066 = vmatprep.mubr.bf16.mxu0 0
    %2067 = vmatmul.mubr.bf16.gmra.mrb[0].mxu0 %v1854
    %v2068 = vpop.f32.mrb[0].mxu0
    %v2069 = vadd.f32 %v1896, %v2068
    %v2070 = vpop.f32.mrb[0].mxu0
    %v2071 = vpop.f32.mrb[0].mxu0
    %v2072 = vadd.f32 %v1896, %v2071
    %v2073 = vpop.f32.mrb[0].mxu0
    %2074 = vmatprep.mubr.bf16.mxu0 0
    %2075 = vmatmul.mubr.bf16.gmra.mrb[0].mxu0 %v1855
    %v2076 = vpop.f32.mrb[0].mxu0
    %v2077 = vadd.f32 %v1896, %v2076
    %v2078 = vpop.f32.mrb[0].mxu0
    %v2079 = vpop.f32.mrb[0].mxu0
    %v2080 = vadd.f32 %v1896, %v2079
    %v2081 = vpop.f32.mrb[0].mxu0
    %2082 = vmatprep.mubr.bf16.mxu0 0
    %2083 = vmatmul.mubr.bf16.gmra.mrb[0].mxu0 %v1856
    %v2084 = vpop.f32.mrb[0].mxu0
    %v2085 = vadd.f32 %v1896, %v2084
    %v2086 = vpop.f32.mrb[0].mxu0
    %v2087 = vpop.f32.mrb[0].mxu0
    %v2088 = vadd.f32 %v1896, %v2087
    %v2089 = vpop.f32.mrb[0].mxu0
    %2090 = vmatprep.mubr.bf16.mxu0 0
    %2091 = vmatmul.mubr.bf16.gmra.mrb[0].mxu0 %v1857
    %v2092 = vpop.f32.mrb[0].mxu0
    %v2093 = vadd.f32 %v1896, %v2092
    %v2094 = vpop.f32.mrb[0].mxu0
    %v2095 = vpop.f32.mrb[0].mxu0
    %v2096 = vadd.f32 %v1896, %v2095
    %v2097 = vpop.f32.mrb[0].mxu0
    %2098 = vmatprep.mubr.bf16.mxu0 0
    %2099 = vmatmul.mubr.bf16.gmra.mrb[0].mxu0 %v1858
    %v2100 = vpop.f32.mrb[0].mxu0
    %v2101 = vadd.f32 %v1896, %v2100
    %v2102 = vpop.f32.mrb[0].mxu0
    %v2103 = vpop.f32.mrb[0].mxu0
    %v2104 = vadd.f32 %v1896, %v2103
    %v2105 = vpop.f32.mrb[0].mxu0
    %2106 = vmatprep.mubr.bf16.mxu0 0
    %2107 = vmatmul.mubr.bf16.gmra.mrb[0].mxu0 %v1859
    %v2108 = vpop.f32.mrb[0].mxu0
    %v2109 = vadd.f32 %v1896, %v2108
    %v2110 = vpop.f32.mrb[0].mxu0
    %v2111 = vpop.f32.mrb[0].mxu0
    %v2112 = vadd.f32 %v1896, %v2111
    %v2113 = vpop.f32.mrb[0].mxu0
    %2114 = vmatprep.mubr.bf16.mxu0 0
    %2115 = vmatmul.mubr.bf16.gmra.mrb[0].mxu0 %v1860
    %v2116 = vpop.f32.mrb[0].mxu0
    %v2117 = vadd.f32 %v1896, %v2116
    %v2118 = vpop.f32.mrb[0].mxu0
    %v2119 = vpop.f32.mrb[0].mxu0
    %v2120 = vadd.f32 %v1896, %v2119
    %v2121 = vpop.f32.mrb[0].mxu0
    %2122 = vmatprep.mubr.bf16.mxu0 0
    %2123 = vmatmul.mubr.bf16.gmra.mrb[0].mxu0 %v1861
    %v2124 = vpop.f32.mrb[0].mxu0
    %v2125 = vadd.f32 %v1896, %v2124
    %v2126 = vpop.f32.mrb[0].mxu0
    %v2127 = vpop.f32.mrb[0].mxu0
    %v2128 = vadd.f32 %v1896, %v2127
    %v2129 = vpop.f32.mrb[0].mxu0
    %2130 = vmatprep.mubr.bf16.mxu0 0
    %2131 = vmatmul.mubr.bf16.gmra.mrb[0].mxu0 %v1862
    %v2132 = vpop.f32.mrb[0].mxu0
    %v2133 = vadd.f32 %v1896, %v2132
    %v2134 = vpop.f32.mrb[0].mxu0
    %v2135 = vpop.f32.mrb[0].mxu0
    %v2136 = vadd.f32 %v1896, %v2135
    %v2137 = vpop.f32.mrb[0].mxu0
    %2138 = vmatprep.mubr.bf16.mxu0 0
    %2139 = vmatmul.mubr.bf16.gmra.mrb[0].mxu0 %v1863
    %v2140 = vpop.f32.mrb[0].mxu0
    %v2141 = vadd.f32 %v1896, %v2140
    %v2142 = vpop.f32.mrb[0].mxu0
    %v2143 = vpop.f32.mrb[0].mxu0
    %v2144 = vadd.f32 %v1896, %v2143
    %v2145 = vpop.f32.mrb[0].mxu0
    %2146 = vmatprep.mubr.bf16.mxu0 0
    %2147 = vmatmul.mubr.bf16.gmra.mrb[0].mxu0 %v1864
    %v2148 = vpop.f32.mrb[0].mxu0
    %v2149 = vadd.f32 %v1896, %v2148
    %v2150 = vpop.f32.mrb[0].mxu0
    %v2151 = vpop.f32.mrb[0].mxu0
    %v2152 = vadd.f32 %v1896, %v2151
    %v2153 = vpop.f32.mrb[0].mxu0
    %2154 = vmatprep.mubr.bf16.mxu0 0
    %2155 = vmatmul.mubr.bf16.gmra.mrb[0].mxu0 %v1865
    %v2156 = vpop.f32.mrb[0].mxu0
    %v2157 = vadd.f32 %v1896, %v2156
    %v2158 = vpop.f32.mrb[0].mxu0
    %v2159 = vpop.f32.mrb[0].mxu0
    %v2160 = vadd.f32 %v1896, %v2159
    %v2161 = vpop.f32.mrb[0].mxu0
    %2162 = vmatprep.mubr.bf16.mxu0 0
    %2163 = vmatmul.mubr.bf16.gmra.mrb[0].mxu0 %v1866
    %v2164 = vpop.f32.mrb[0].mxu0
    %v2165 = vadd.f32 %v1896, %v2164
    %v2166 = vpop.f32.mrb[0].mxu0
    %v2167 = vpop.f32.mrb[0].mxu0
    %v2168 = vadd.f32 %v1896, %v2167
    %v2169 = vpop.f32.mrb[0].mxu0
    %2170 = vmatprep.mubr.bf16.mxu0 0
    %2171 = vmatmul.mubr.bf16.gmra.mrb[0].mxu0 %v1867
    %v2172 = vpop.f32.mrb[0].mxu0
    %v2173 = vadd.f32 %v1896, %v2172
    %v2174 = vpop.f32.mrb[0].mxu0
    %v2175 = vpop.f32.mrb[0].mxu0
    %v2176 = vadd.f32 %v1896, %v2175
    %v2177 = vpop.f32.mrb[0].mxu0
    %2178 = vmatprep.mubr.bf16.mxu0 0
    %2179 = vmatmul.mubr.bf16.gmra.mrb[0].mxu0 %v1868
    %v2180 = vpop.f32.mrb[0].mxu0
    %v2181 = vadd.f32 %v1896, %v2180
    %v2182 = vpop.f32.mrb[0].mxu0
    %v2183 = vpop.f32.mrb[0].mxu0
    %v2184 = vadd.f32 %v1896, %v2183
    %v2185 = vpop.f32.mrb[0].mxu0
    %2186 = vmatprep.mubr.bf16.mxu0 0
    %2187 = vmatmul.mubr.bf16.gmra.mrb[0].mxu0 %v1869
    %v2188 = vpop.f32.mrb[0].mxu0
    %v2189 = vadd.f32 %v1896, %v2188
    %v2190 = vpop.f32.mrb[0].mxu0
    %v2191 = vpop.f32.mrb[0].mxu0
    %v2192 = vadd.f32 %v1896, %v2191
    %v2193 = vpop.f32.mrb[0].mxu0
    %2194 = vmatprep.mubr.bf16.mxu0 0
    %2195 = vmatmul.mubr.bf16.gmra.mrb[0].mxu0 %v1870
    %v2196 = vpop.f32.mrb[0].mxu0
    %v2197 = vadd.f32 %v1896, %v2196
    %v2198 = vpop.f32.mrb[0].mxu0
    %v2199 = vpop.f32.mrb[0].mxu0
    %v2200 = vadd.f32 %v1896, %v2199
    %v2201 = vpop.f32.mrb[0].mxu0
    %2202 = vmatprep.mubr.bf16.mxu0 0
    %2203 = vmatmul.mubr.bf16.gmra.mrb[0].mxu0 %v1871
    %v2204 = vpop.f32.mrb[0].mxu0
    %v2205 = vadd.f32 %v1896, %v2204
    %v2206 = vpop.f32.mrb[0].mxu0
    %v2207 = vpop.f32.mrb[0].mxu0
    %v2208 = vadd.f32 %v1896, %v2207
    %v2209 = vpop.f32.mrb[0].mxu0
    %2210 = vmatprep.mubr.bf16.mxu0 0
    %2211 = vmatmul.mubr.bf16.gmra.mrb[0].mxu0 %v1872
    %v2212 = vpop.f32.mrb[0].mxu0
    %v2213 = vadd.f32 %v1896, %v2212
    %v2214 = vpop.f32.mrb[0].mxu0
    %v2215 = vpop.f32.mrb[0].mxu0
    %v2216 = vadd.f32 %v1896, %v2215
    %v2217 = vpop.f32.mrb[0].mxu0
    %2218 = vmatprep.mubr.bf16.mxu0 0
    %2219 = vmatmul.mubr.bf16.gmra.mrb[0].mxu0 %v1873
    %v2220 = vpop.f32.mrb[0].mxu0
    %v2221 = vadd.f32 %v1896, %v2220
    %v2222 = vpop.f32.mrb[0].mxu0
    %v2223 = vpop.f32.mrb[0].mxu0
    %v2224 = vadd.f32 %v1896, %v2223
    %v2225 = vpop.f32.mrb[0].mxu0
    %2226 = vmatprep.mubr.bf16.mxu0 0
    %2227 = vmatmul.mubr.bf16.gmra.mrb[0].mxu0 %v1874
    %v2228 = vpop.f32.mrb[0].mxu0
    %v2229 = vadd.f32 %v1896, %v2228
    %v2230 = vpop.f32.mrb[0].mxu0
    %v2231 = vpop.f32.mrb[0].mxu0
    %v2232 = vadd.f32 %v1896, %v2231
    %v2233 = vpop.f32.mrb[0].mxu0
    %2234 = vdwg.mxu0
    %v2235 = vtanh.pop %v1981
    %v2236 = vtanh.pop %v1984
    %v2237 = vtanh.pop %v1989
    %v2238 = vtanh.pop %v1992
    %v2239 = vtanh.pop %v1997
    %v2240 = vtanh.pop %v2000
    %v2241 = vtanh.pop %v2005
    %v2242 = vtanh.pop %v2008
    %v2243 = vtanh.pop %v2013
    %v2244 = vtanh.pop %v2016
    %v2245 = vtanh.pop %v2021
    %v2246 = vtanh.pop %v2024
    %v2247 = vtanh.pop %v2029
    %v2248 = vtanh.pop %v2032
    %v2249 = vtanh.pop %v2037
    %v2250 = vtanh.pop %v2040
    %v2251 = vtanh.pop %v2045
    %v2252 = vtanh.pop %v2048
    %v2253 = vtanh.pop %v2053
    %v2254 = vtanh.pop %v2056
    %v2255 = vtanh.pop %v2061
    %v2256 = vtanh.pop %v2064
    %v2257 = vtanh.pop %v2069
    %v2258 = vtanh.pop %v2072
    %v2259 = vtanh.pop %v2077
    %v2260 = vtanh.pop %v2080
    %v2261 = vtanh.pop %v2085
    %v2262 = vtanh.pop %v2088
    %v2263 = vtanh.pop %v2093
    %v2264 = vtanh.pop %v2096
    %v2265 = vtanh.pop %v2101
    %v2266 = vtanh.pop %v2104
    %v2267 = vtanh.pop %v2109
    %v2268 = vtanh.pop %v2112
    %v2269 = vtanh.pop %v2117
    %v2270 = vtanh.pop %v2120
    %v2271 = vtanh.pop %v2125
    %v2272 = vtanh.pop %v2128
    %v2273 = vtanh.pop %v2133
    %v2274 = vtanh.pop %v2136
    %v2275 = vtanh.pop %v2141
    %v2276 = vtanh.pop %v2144
    %v2277 = vtanh.pop %v2149
    %v2278 = vtanh.pop %v2152
    %v2279 = vtanh.pop %v2157
    %v2280 = vtanh.pop %v2160
    %v2281 = vtanh.pop %v2165
    %v2282 = vtanh.pop %v2168
    %v2283 = vtanh.pop %v2173
    %v2284 = vtanh.pop %v2176
    %v2285 = vtanh.pop %v2181
    %v2286 = vtanh.pop %v2184
    %v2287 = vtanh.pop %v2189
    %v2288 = vtanh.pop %v2192
    %v2289 = vtanh.pop %v2197
    %v2290 = vtanh.pop %v2200
    %v2291 = vtanh.pop %v2205
    %v2292 = vtanh.pop %v2208
    %v2293 = vtanh.pop %v2213
    %v2294 = vtanh.pop %v2216
    %v2295 = vtanh.pop %v2221
    %v2296 = vtanh.pop %v2224
    %v2297 = vtanh.pop %v2229
    %v2298 = vtanh.pop %v2232
    %v2299 = vmul.f32 %v2235, 3.1415927
    %v2300 = vmul.f32 %v2236, 3.1415927
    %v2301 = vmul.f32 %v2237, 3.1415927
    %v2302 = vmul.f32 %v2238, 3.1415927
    %v2303 = vmul.f32 %v2239, 3.1415927
    %v2304 = vmul.f32 %v2240, 3.1415927
    %v2305 = vmul.f32 %v2241, 3.1415927
    %v2306 = vmul.f32 %v2242, 3.1415927
    %v2307 = vmul.f32 %v2243, 3.1415927
    %v2308 = vmul.f32 %v2244, 3.1415927
    %v2309 = vmul.f32 %v2245, 3.1415927
    %v2310 = vmul.f32 %v2246, 3.1415927
    %v2311 = vmul.f32 %v2247, 3.1415927
    %v2312 = vmul.f32 %v2248, 3.1415927
    %v2313 = vmul.f32 %v2249, 3.1415927
    %v2314 = vmul.f32 %v2250, 3.1415927
    %v2315 = vmul.f32 %v2251, 3.1415927
    %v2316 = vmul.f32 %v2252, 3.1415927
    %v2317 = vmul.f32 %v2253, 3.1415927
    %v2318 = vmul.f32 %v2254, 3.1415927
    %v2319 = vmul.f32 %v2255, 3.1415927
    %v2320 = vmul.f32 %v2256, 3.1415927
    %v2321 = vmul.f32 %v2257, 3.1415927
    %v2322 = vmul.f32 %v2258, 3.1415927
    %v2323 = vmul.f32 %v2259, 3.1415927
    %v2324 = vmul.f32 %v2260, 3.1415927
    %v2325 = vmul.f32 %v2261, 3.1415927
    %v2326 = vmul.f32 %v2262, 3.1415927
    %v2327 = vmul.f32 %v2263, 3.1415927
    %v2328 = vmul.f32 %v2264, 3.1415927
    %v2329 = vmul.f32 %v2265, 3.1415927
    %v2330 = vmul.f32 %v2266, 3.1415927
    %v2331 = vmul.f32 %v2267, 3.1415927
    %v2332 = vmul.f32 %v2268, 3.1415927
    %v2333 = vmul.f32 %v2269, 3.1415927
    %v2334 = vmul.f32 %v2270, 3.1415927
    %v2335 = vmul.f32 %v2271, 3.1415927
    %v2336 = vmul.f32 %v2272, 3.1415927
    %v2337 = vmul.f32 %v2273, 3.1415927
    %v2338 = vmul.f32 %v2274, 3.1415927
    %v2339 = vmul.f32 %v2275, 3.1415927
    %v2340 = vmul.f32 %v2276, 3.1415927
    %v2341 = vmul.f32 %v2277, 3.1415927
    %v2342 = vmul.f32 %v2278, 3.1415927
    %v2343 = vmul.f32 %v2279, 3.1415927
    %v2344 = vmul.f32 %v2280, 3.1415927
    %v2345 = vmul.f32 %v2281, 3.1415927
    %v2346 = vmul.f32 %v2282, 3.1415927
    %v2347 = vmul.f32 %v2283, 3.1415927
    %v2348 = vmul.f32 %v2284, 3.1415927
    %v2349 = vmul.f32 %v2285, 3.1415927
    %v2350 = vmul.f32 %v2286, 3.1415927
    %v2351 = vmul.f32 %v2287, 3.1415927
    %v2352 = vmul.f32 %v2288, 3.1415927
    %v2353 = vmul.f32 %v2289, 3.1415927
    %v2354 = vmul.f32 %v2290, 3.1415927
    %v2355 = vmul.f32 %v2291, 3.1415927
    %v2356 = vmul.f32 %v2292, 3.1415927
    %v2357 = vmul.f32 %v2293, 3.1415927
    %v2358 = vmul.f32 %v2294, 3.1415927
    %v2359 = vmul.f32 %v2295, 3.1415927
    %v2360 = vmul.f32 %v2296, 3.1415927
    %v2361 = vmul.f32 %v2297, 3.1415927
    %v2362 = vmul.f32 %v2298, 3.1415927
    %2363 = vst [vmem:[#allocation3] sm:$0xff] %v2299
    %2364 = vst [vmem:[#allocation3 + $0x8] sm:$0xff] %v2300
    %2365 = vst [vmem:[#allocation3 + $0x10] sm:$0xff] %v2301
    %2366 = vst [vmem:[#allocation3 + $0x18] sm:$0xff] %v2302
    %2367 = vst [vmem:[#allocation3 + $0x20] sm:$0xff] %v2303
    %2368 = vst [vmem:[#allocation3 + $0x28] sm:$0xff] %v2304
    %2369 = vst [vmem:[#allocation3 + $0x30] sm:$0xff] %v2305
    %2370 = vst [vmem:[#allocation3 + $0x38] sm:$0xff] %v2306
    %2371 = vst [vmem:[#allocation3 + $0x40] sm:$0xff] %v2307
    %2372 = vst [vmem:[#allocation3 + $0x48] sm:$0xff] %v2308
    %2373 = vst [vmem:[#allocation3 + $0x50] sm:$0xff] %v2309
    %2374 = vst [vmem:[#allocation3 + $0x58] sm:$0xff] %v2310
    %2375 = vst [vmem:[#allocation3 + $0x60] sm:$0xff] %v2311
    %2376 = vst [vmem:[#allocation3 + $0x68] sm:$0xff] %v2312
    %2377 = vst [vmem:[#allocation3 + $0x70] sm:$0xff] %v2313
    %2378 = vst [vmem:[#allocation3 + $0x78] sm:$0xff] %v2314
    %2379 = vst [vmem:[#allocation3 + $0x80] sm:$0xff] %v2315
    %2380 = vst [vmem:[#allocation3 + $0x88] sm:$0xff] %v2316
    %2381 = vst [vmem:[#allocation3 + $0x90] sm:$0xff] %v2317
    %2382 = vst [vmem:[#allocation3 + $0x98] sm:$0xff] %v2318
    %2383 = vst [vmem:[#allocation3 + $0xa0] sm:$0xff] %v2319
    %2384 = vst [vmem:[#allocation3 + $0xa8] sm:$0xff] %v2320
    %2385 = vst [vmem:[#allocation3 + $0xb0] sm:$0xff] %v2321
    %2386 = vst [vmem:[#allocation3 + $0xb8] sm:$0xff] %v2322
    %2387 = vst [vmem:[#allocation3 + $0xc0] sm:$0xff] %v2323
    %2388 = vst [vmem:[#allocation3 + $0xc8] sm:$0xff] %v2324
    %2389 = vst [vmem:[#allocation3 + $0xd0] sm:$0xff] %v2325
    %2390 = vst [vmem:[#allocation3 + $0xd8] sm:$0xff] %v2326
    %2391 = vst [vmem:[#allocation3 + $0xe0] sm:$0xff] %v2327
    %2392 = vst [vmem:[#allocation3 + $0xe8] sm:$0xff] %v2328
    %2393 = vst [vmem:[#allocation3 + $0xf0] sm:$0xff] %v2329
    %2394 = vst [vmem:[#allocation3 + $0xf8] sm:$0xff] %v2330
    %2395 = vst [vmem:[#allocation3 + $0x100] sm:$0xff] %v2331
    %2396 = vst [vmem:[#allocation3 + $0x108] sm:$0xff] %v2332
    %2397 = vst [vmem:[#allocation3 + $0x110] sm:$0xff] %v2333
    %2398 = vst [vmem:[#allocation3 + $0x118] sm:$0xff] %v2334
    %2399 = vst [vmem:[#allocation3 + $0x120] sm:$0xff] %v2335
    %2400 = vst [vmem:[#allocation3 + $0x128] sm:$0xff] %v2336
    %2401 = vst [vmem:[#allocation3 + $0x130] sm:$0xff] %v2337
    %2402 = vst [vmem:[#allocation3 + $0x138] sm:$0xff] %v2338
    %2403 = vst [vmem:[#allocation3 + $0x140] sm:$0xff] %v2339
    %2404 = vst [vmem:[#allocation3 + $0x148] sm:$0xff] %v2340
    %2405 = vst [vmem:[#allocation3 + $0x150] sm:$0xff] %v2341
    %2406 = vst [vmem:[#allocation3 + $0x158] sm:$0xff] %v2342
    %2407 = vst [vmem:[#allocation3 + $0x160] sm:$0xff] %v2343
    %2408 = vst [vmem:[#allocation3 + $0x168] sm:$0xff] %v2344
    %2409 = vst [vmem:[#allocation3 + $0x170] sm:$0xff] %v2345
    %2410 = vst [vmem:[#allocation3 + $0x178] sm:$0xff] %v2346
    %2411 = vst [vmem:[#allocation3 + $0x180] sm:$0xff] %v2347
    %2412 = vst [vmem:[#allocation3 + $0x188] sm:$0xff] %v2348
    %2413 = vst [vmem:[#allocation3 + $0x190] sm:$0xff] %v2349
    %2414 = vst [vmem:[#allocation3 + $0x198] sm:$0xff] %v2350
    %2415 = vst [vmem:[#allocation3 + $0x1a0] sm:$0xff] %v2351
    %2416 = vst [vmem:[#allocation3 + $0x1a8] sm:$0xff] %v2352
    %2417 = vst [vmem:[#allocation3 + $0x1b0] sm:$0xff] %v2353
    %2418 = vst [vmem:[#allocation3 + $0x1b8] sm:$0xff] %v2354
    %2419 = vst [vmem:[#allocation3 + $0x1c0] sm:$0xff] %v2355
    %2420 = vst [vmem:[#allocation3 + $0x1c8] sm:$0xff] %v2356
    %2421 = vst [vmem:[#allocation3 + $0x1d0] sm:$0xff] %v2357
    %2422 = vst [vmem:[#allocation3 + $0x1d8] sm:$0xff] %v2358
    %2423 = vst [vmem:[#allocation3 + $0x1e0] sm:$0xff] %v2359
    %2424 = vst [vmem:[#allocation3 + $0x1e8] sm:$0xff] %v2360
    %2425 = vst [vmem:[#allocation3 + $0x1f0] sm:$0xff] %v2361
    %2426 = vst [vmem:[#allocation3 + $0x1f8] sm:$0xff] %v2362
    // Predicated region
    $region22: #{tpu_custom_call.1} parent=1 // pred_check
      _
    $region23: #{tpu_custom_call.1} parent=1 // pred_check_branch
      %2428 = sbr.rel (0) target = $region25
    $region24: #{tpu_custom_call.1} parent=1 // pred_region
      %s2430 = ssub.s32 8192, 8192
      %2431 = vsyncadd [#allocation4], %s2430
      %s2432 = sshll.u32 [#allocation3], 4
      %s2433 = int_to_ptr.vmem [resolvable:$true] %s2432
      %2438 = dma.vmem_to_hbm [thread:$0]  %s2433, 8192, %s5, [#allocation4], 128, 128, 8
    $region25: #{tpu_custom_call.1} parent=1 // pred_fallthru
      _
    // Predicated region
    $region26: #{tpu_custom_call.1} parent=1 // pred_check
      _
    $region27: #{tpu_custom_call.1} parent=1 // pred_check_branch
      %2440 = sbr.rel (0) target = $region29
    $region28: #{tpu_custom_call.1} parent=1 // pred_region
      %2441 = dma.done [#allocation4], 8192
    $region29: #{tpu_custom_call.1} parent=1 // pred_fallthru
      _
    %2442 = vsyncpa [#allocation4], 1

</llo_original>
